<compile_context>
chip_gen: v6e
topology: v6e:2x2x1
jax: 0.10.0
libtpu: 0.0.40
codegen_flags: <defaults>
</compile_context>

<pallas_src>
import functools

import jax
import jax.numpy as jnp
from jax.experimental import pallas as pl
from jax.experimental.pallas import tpu as pltpu


# ---------------------------------------------------------------------------
# GroupNorm + SiLU kernel
# ---------------------------------------------------------------------------
def _gn_silu_kernel(x_ref, g_ref, b_ref, oh_ref, oht_ref, o_ref, *, eps, group_size):
    # x_ref: (1, HW, C)   g/b: (1, C)   oh: (C, G)   oht: (G, C)
    x = x_ref[0].astype(jnp.float32)                         # (HW, C)
    oh = oh_ref[...]                                         # (C, G)
    hw = x.shape[0]
    cnt = float(hw * group_size)

    # per-group mean via MXU:  sum over channels-in-group, then over HW
    sum_g = jnp.sum(jnp.dot(x, oh, preferred_element_type=jnp.float32),
                    axis=0, keepdims=True)                   # (1, G)
    mean_g = sum_g / cnt
    mean_c = jnp.dot(mean_g, oht_ref[...],
                     preferred_element_type=jnp.float32)     # (1, C)

    xc = x - mean_c
    var_g = jnp.sum(jnp.dot(xc * xc, oh, preferred_element_type=jnp.float32),
                    axis=0, keepdims=True) / cnt             # (1, G)
    rstd_c = jnp.dot(jax.lax.rsqrt(var_g + eps), oht_ref[...],
                     preferred_element_type=jnp.float32)     # (1, C)

    y = xc * rstd_c * g_ref[...] + b_ref[...]
    o_ref[0] = (y * jax.nn.sigmoid(y)).astype(o_ref.dtype)   # SiLU


def _gn_silu(x_flat, gamma, beta, *, groups, eps):
    N, HW, C = x_flat.shape
    G = groups
    gs = C // G
    ch = jnp.arange(C, dtype=jnp.int32)
    onehot = (ch[:, None] // gs == jnp.arange(G, dtype=jnp.int32)[None, :]
              ).astype(jnp.float32)                           # (C, G)
    onehot_t = onehot.T                                       # (G, C)
    gamma2 = gamma.reshape(1, C).astype(jnp.float32)
    beta2 = beta.reshape(1, C).astype(jnp.float32)

    kernel = functools.partial(_gn_silu_kernel, eps=eps, group_size=gs)
    flops = 4 * N * HW * C * G + 10 * N * HW * C
    bytes_acc = 4 * (2 * N * HW * C + 2 * C + 2 * C * G)

    return pl.pallas_call(
        kernel,
        out_shape=jax.ShapeDtypeStruct((N, HW, C), x_flat.dtype),
        grid_spec=pltpu.PrefetchScalarGridSpec(
            num_scalar_prefetch=0,
            grid=(N,),
            in_specs=[
                pl.BlockSpec((1, HW, C), lambda n: (n, 0, 0)),
                pl.BlockSpec((1, C), lambda n: (0, 0)),
                pl.BlockSpec((1, C), lambda n: (0, 0)),
                pl.BlockSpec((C, G), lambda n: (0, 0)),
                pl.BlockSpec((G, C), lambda n: (0, 0)),
            ],
            out_specs=pl.BlockSpec((1, HW, C), lambda n: (n, 0, 0)),
        ),
        compiler_params=pltpu.CompilerParams(dimension_semantics=("parallel",)),
        cost_estimate=pl.CostEstimate(flops=flops,
                                      transcendentals=N * HW * C,
                                      bytes_accessed=bytes_acc),
    )(x_flat, gamma2, beta2, onehot, onehot_t)


# ---------------------------------------------------------------------------
# 3x3 conv kernel (im2col folded in as 9 tap matmuls), bias + optional
# residual / 1x1-shortcut fused.
# ---------------------------------------------------------------------------
def _conv3x3_kernel(*refs, H, W, mode):
    if mode == "plain":
        x_ref, w_ref, b_ref, o_ref = refs
    elif mode == "add":
        x_ref, w_ref, b_ref, r_ref, o_ref = refs
    else:  # "shortcut"
        x_ref, w_ref, b_ref, r_ref, wsc_ref, bsc_ref, o_ref = refs

    cin = x_ref.shape[-1]
    tn = o_ref.shape[-1]
    acc = jnp.zeros((H * W, tn), jnp.float32)

    # 9 shifted tap matmuls against the padded NHWC block (in-kernel im2col)
    for kh in range(3):
        for kw in range(3):
            tap = x_ref[0, kh:kh + H, kw:kw + W, :].reshape(H * W, cin)
            acc = acc + jnp.dot(tap, w_ref[kh * 3 + kw],
                                preferred_element_type=jnp.float32)

    acc = acc + b_ref[...].astype(jnp.float32)

    if mode == "add":
        acc = acc + r_ref[0].astype(jnp.float32)
    elif mode == "shortcut":
        sc = jnp.dot(r_ref[0].astype(jnp.float32), wsc_ref[...],
                     preferred_element_type=jnp.float32)
        acc = acc + sc + bsc_ref[...].astype(jnp.float32)

    o_ref[0] = acc.astype(o_ref.dtype)


def _pick_tile(c):
    for t in (256, 128):        # 256-wide tiles feed v6e/v7x 256^2 MXUs
        if c % t == 0:
            return t
    return c


def _conv3x3(x_pad, w9, bias2d, *, H, W, residual=None, shortcut=None):
    N, Hp, Wp, Cin = x_pad.shape
    Cout = w9.shape[-1]
    tn = _pick_tile(Cout)
    nj = Cout // tn
    mode = "plain" if residual is None else ("shortcut" if shortcut is not None else "add")
    kernel = functools.partial(_conv3x3_kernel, H=H, W=W, mode=mode)

    in_specs = [
        pl.BlockSpec((1, Hp, Wp, Cin), lambda n, j: (n, 0, 0, 0)),
        pl.BlockSpec((9, Cin, tn), lambda n, j: (0, 0, j)),
        pl.BlockSpec((1, tn), lambda n, j: (0, j)),
    ]
    args = [x_pad, w9, bias2d]
    flops = 2 * N * H * W * 9 * Cin * Cout
    bytes_acc = 4 * (x_pad.size + w9.size + bias2d.size + N * H * W * Cout)

    if mode == "add":
        in_specs.append(pl.BlockSpec((1, H * W, tn), lambda n, j: (n, 0, j)))
        args.append(residual)
        bytes_acc += 4 * residual.size
    elif mode == "shortcut":
        c_res = residual.shape[-1]
        wsc, bsc = shortcut
        in_specs.append(pl.BlockSpec((1, H * W, c_res), lambda n, j: (n, 0, 0)))
        in_specs.append(pl.BlockSpec((c_res, tn), lambda n, j: (0, j)))
        in_specs.append(pl.BlockSpec((1, tn), lambda n, j: (0, j)))
        args += [residual, wsc, bsc]
        flops += 2 * N * H * W * c_res * Cout
        bytes_acc += 4 * (residual.size + wsc.size + bsc.size)

    return pl.pallas_call(
        kernel,
        out_shape=jax.ShapeDtypeStruct((N, H * W, Cout), x_pad.dtype),
        grid_spec=pltpu.PrefetchScalarGridSpec(
            num_scalar_prefetch=0,
            grid=(N, nj),
            in_specs=in_specs,
            out_specs=pl.BlockSpec((1, H * W, tn), lambda n, j: (n, 0, j)),
        ),
        compiler_params=pltpu.CompilerParams(
            dimension_semantics=("parallel", "parallel")),
        cost_estimate=pl.CostEstimate(flops=flops, transcendentals=0,
                                      bytes_accessed=bytes_acc),
    )(*args)


# ---------------------------------------------------------------------------
# Full ResnetBlock forward
# ---------------------------------------------------------------------------
def resnet_block_forward(x_nchw, *, norm1_gamma, norm1_beta, conv1_w, conv1_b,
                         norm2_gamma, norm2_beta, conv2_w, conv2_b,
                         shortcut_w=None, shortcut_b=None, groups=32, eps=1e-5):
    """Matches ResnetBlock.forward (temb path unused: forward takes no temb)."""
    N, Cin, H, W = x_nchw.shape
    Cout = conv1_w.shape[0]

    # Single layout conversion at the boundary; everything else stays NHWC.
    x_nhwc = jnp.transpose(x_nchw, (0, 2, 3, 1))
    x_flat = x_nhwc.reshape(N, H * W, Cin)

    # norm1 + SiLU
    h = _gn_silu(x_flat, norm1_gamma, norm1_beta, groups=groups, eps=eps)

    # conv1
    h_pad = jnp.pad(h.reshape(N, H, W, Cin), ((0, 0), (1, 1), (1, 1), (0, 0)))
    w1 = jnp.transpose(conv1_w, (2, 3, 1, 0)).reshape(9, Cin, Cout)
    h = _conv3x3(h_pad, w1, conv1_b.reshape(1, Cout), H=H, W=W)

    # norm2 + SiLU
    h = _gn_silu(h, norm2_gamma, norm2_beta, groups=groups, eps=eps)

    # conv2 + (optional 1x1 shortcut) + residual add, all fused
    h_pad = jnp.pad(h.reshape(N, H, W, Cout), ((0, 0), (1, 1), (1, 1), (0, 0)))
    w2 = jnp.transpose(conv2_w, (2, 3, 1, 0)).reshape(9, Cout, Cout)
    if shortcut_w is not None:
        wsc = jnp.transpose(shortcut_w[:, :, 0, 0], (1, 0))      # (Cin, Cout)
        out = _conv3x3(h_pad, w2, conv2_b.reshape(1, Cout), H=H, W=W,
                       residual=x_flat,
                       shortcut=(wsc, shortcut_b.reshape(1, Cout)))
    else:
        out = _conv3x3(h_pad, w2, conv2_b.reshape(1, Cout), H=H, W=W,
                       residual=x_flat)

    out = out.reshape(N, H, W, Cout)
    return jnp.transpose(out, (0, 3, 1, 2))                      # back to NCHW


# ---------------------------------------------------------------------------
# Pure-JAX reference for validation
# ---------------------------------------------------------------------------
def _ref_forward(x, p, *, groups=32, eps=1e-5):
    def gn(x, gamma, beta):
        N, C, H, W = x.shape
        xg = x.reshape(N, groups, C // groups, H, W)
        m = xg.mean(axis=(2, 3, 4), keepdims=True)
        v = ((xg - m) ** 2).mean(axis=(2, 3, 4), keepdims=True)
        xn = ((xg - m) * jax.lax.rsqrt(v + eps)).reshape(N, C, H, W)
        return xn * gamma[None, :, None, None] + beta[None, :, None, None]

    def silu(x):
        return x * jax.nn.sigmoid(x)

    def conv(x, w, b, pad):
        y = jax.lax.conv_general_dilated(
            x, w, (1, 1), ((pad, pad), (pad, pad)),
            dimension_numbers=("NCHW", "OIHW", "NCHW"))
        return y + b[None, :, None, None]

    h = silu(gn(x, p["g1"], p["b1"]))
    h = conv(h, p["w1"], p["bb1"], 1)
    h = silu(gn(h, p["g2"], p["b2"]))
    h = conv(h, p["w2"], p["bb2"], 1)
    sc = conv(x, p["wsc"], p["bsc"], 0) if p.get("wsc") is not None else x
    return sc + h


if __name__ == "__main__":
    key = jax.random.PRNGKey(0)
    ks = jax.random.split(key, 12)

    # GroupNorm(32) requires channels % 32 == 0; real SVD-VAE blocks use
    # 128/256/512 channels, so pick the smallest realistic (lane-dense) sizes.
    N, Cin, Cout, H, W = 2, 128, 256, 16, 16
    groups, eps = 32, 1e-5

    x = jax.random.normal(ks[0], (N, Cin, H, W), jnp.float32)
    g1 = 1.0 + 0.1 * jax.random.normal(ks[1], (Cin,), jnp.float32)
    b1 = 0.1 * jax.random.normal(ks[2], (Cin,), jnp.float32)
    w1 = 0.05 * jax.random.normal(ks[3], (Cout, Cin, 3, 3), jnp.float32)
    bb1 = 0.1 * jax.random.normal(ks[4], (Cout,), jnp.float32)
    g2 = 1.0 + 0.1 * jax.random.normal(ks[5], (Cout,), jnp.float32)
    b2 = 0.1 * jax.random.normal(ks[6], (Cout,), jnp.float32)
    w2 = 0.05 * jax.random.normal(ks[7], (Cout, Cout, 3, 3), jnp.float32)
    bb2 = 0.1 * jax.random.normal(ks[8], (Cout,), jnp.float32)
    wsc = 0.1 * jax.random.normal(ks[9], (Cout, Cin, 1, 1), jnp.float32)
    bsc = 0.1 * jax.random.normal(ks[10], (Cout,), jnp.float32)

    y = resnet_block_forward(
        x,
        norm1_gamma=g1, norm1_beta=b1, conv1_w=w1, conv1_b=bb1,
        norm2_gamma=g2, norm2_beta=b2, conv2_w=w2, conv2_b=bb2,
        shortcut_w=wsc, shortcut_b=bsc, groups=groups, eps=eps)
    y = jax.block_until_ready(y)

    ref = _ref_forward(
        x, dict(g1=g1, b1=b1, w1=w1, bb1=bb1, g2=g2, b2=b2, w2=w2, bb2=bb2,
                wsc=wsc, bsc=bsc), groups=groups, eps=eps)
    ref = jax.block_until_ready(ref)

    assert y.shape == (N, Cout, H, W), y.shape
    assert jnp.allclose(y, ref, atol=2e-3, rtol=2e-3), \
        float(jnp.max(jnp.abs(y - ref)))
    print("KERNEL_OK")
</pallas_src>

<mosaic_0001>
module attributes {stable_mosaic.version = 11 : i64} {
  func.func @_gn_silu_kernel(%arg0: i32, %arg1: memref<1x256x128xf32, #tpu.memory_space<vmem>>, %arg2: memref<1x128xf32, #tpu.memory_space<vmem>>, %arg3: memref<1x128xf32, #tpu.memory_space<vmem>>, %arg4: memref<128x32xf32, #tpu.memory_space<vmem>>, %arg5: memref<32x128xf32, #tpu.memory_space<vmem>>, %arg6: memref<1x256x128xf32, #tpu.memory_space<vmem>>) attributes {dimension_semantics = [#tpu.dimension_semantics<parallel>], iteration_bounds = array<i64: 2>, scalar_prefetch = 0 : i64, scratch_operands = 0 : i64, tpu.core_type = #tpu.core_type<tc>, window_params = [{transform_indices = @transform_0, window_bounds = array<i64: 1, 256, 128>}, {pipeline_mode = #tpu.pipeline_mode<synchronous>, transform_indices = @transform_1, window_bounds = array<i64: 1, 128>}, {pipeline_mode = #tpu.pipeline_mode<synchronous>, transform_indices = @transform_2, window_bounds = array<i64: 1, 128>}, {pipeline_mode = #tpu.pipeline_mode<synchronous>, transform_indices = @transform_3, window_bounds = array<i64: 128, 32>}, {pipeline_mode = #tpu.pipeline_mode<synchronous>, transform_indices = @transform_4, window_bounds = array<i64: 32, 128>}, {transform_indices = @transform_5, window_bounds = array<i64: 1, 256, 128>}]} {
    %c0 = arith.constant 0 : index
    %c0_0 = arith.constant 0 : index
    %c0_1 = arith.constant 0 : index
    %0 = vector.load %arg1[%c0, %c0_0, %c0_1] : memref<1x256x128xf32, #tpu.memory_space<vmem>>, vector<1x256x128xf32>
    %1 = vector.shape_cast %0 : vector<1x256x128xf32> to vector<256x128xf32>
    %c0_2 = arith.constant 0 : index
    %c0_3 = arith.constant 0 : index
    %2 = vector.load %arg4[%c0_2, %c0_3] : memref<128x32xf32, #tpu.memory_space<vmem>>, vector<128x32xf32>
    %cst = arith.constant dense<0.000000e+00> : vector<256x32xf32>
    %3 = tpu.matmul %1, %2, %cst {dimension_numbers = #tpu.dot_dimension_numbers<[1], [0], [0], [1], [0, 0, 1, 1], [], []>} : vector<256x128xf32>, vector<128x32xf32>, vector<256x32xf32> -> vector<256x32xf32>
    %cst_4 = arith.constant dense<0.000000e+00> : vector<32xf32>
    %4 = vector.multi_reduction <add>, %3, %cst_4 [0] : vector<256x32xf32> to vector<32xf32>
    %5 = vector.shape_cast %4 : vector<32xf32> to vector<1x32xf32>
    %cst_5 = arith.constant 1.024000e+03 : f32
    %6 = vector.broadcast %cst_5 : f32 to vector<1x32xf32>
    %7 = arith.divf %5, %6 : vector<1x32xf32>
    %c0_6 = arith.constant 0 : index
    %c0_7 = arith.constant 0 : index
    %8 = vector.load %arg5[%c0_6, %c0_7] : memref<32x128xf32, #tpu.memory_space<vmem>>, vector<32x128xf32>
    %cst_8 = arith.constant dense<0.000000e+00> : vector<1x128xf32>
    %9 = tpu.matmul %7, %8, %cst_8 {dimension_numbers = #tpu.dot_dimension_numbers<[1], [0], [0], [1], [0, 0, 1, 1], [], []>} : vector<1x32xf32>, vector<32x128xf32>, vector<1x128xf32> -> vector<1x128xf32>
    %10 = vector.broadcast %9 : vector<1x128xf32> to vector<256x128xf32>
    %11 = arith.subf %1, %10 : vector<256x128xf32>
    %12 = arith.mulf %11, %11 : vector<256x128xf32>
    %cst_9 = arith.constant dense<0.000000e+00> : vector<256x32xf32>
    %13 = tpu.matmul %12, %2, %cst_9 {dimension_numbers = #tpu.dot_dimension_numbers<[1], [0], [0], [1], [0, 0, 1, 1], [], []>} : vector<256x128xf32>, vector<128x32xf32>, vector<256x32xf32> -> vector<256x32xf32>
    %cst_10 = arith.constant dense<0.000000e+00> : vector<32xf32>
    %14 = vector.multi_reduction <add>, %13, %cst_10 [0] : vector<256x32xf32> to vector<32xf32>
    %15 = vector.shape_cast %14 : vector<32xf32> to vector<1x32xf32>
    %cst_11 = arith.constant 1.024000e+03 : f32
    %16 = vector.broadcast %cst_11 : f32 to vector<1x32xf32>
    %17 = arith.divf %15, %16 : vector<1x32xf32>
    %cst_12 = arith.constant 9.99999974E-6 : f32
    %18 = vector.broadcast %cst_12 : f32 to vector<1x32xf32>
    %19 = arith.addf %17, %18 : vector<1x32xf32>
    %20 = math.rsqrt %19 : vector<1x32xf32>
    %c0_13 = arith.constant 0 : index
    %c0_14 = arith.constant 0 : index
    %21 = vector.load %arg5[%c0_13, %c0_14] : memref<32x128xf32, #tpu.memory_space<vmem>>, vector<32x128xf32>
    %cst_15 = arith.constant dense<0.000000e+00> : vector<1x128xf32>
    %22 = tpu.matmul %20, %21, %cst_15 {dimension_numbers = #tpu.dot_dimension_numbers<[1], [0], [0], [1], [0, 0, 1, 1], [], []>} : vector<1x32xf32>, vector<32x128xf32>, vector<1x128xf32> -> vector<1x128xf32>
    %23 = vector.broadcast %22 : vector<1x128xf32> to vector<256x128xf32>
    %24 = arith.mulf %11, %23 : vector<256x128xf32>
    %c0_16 = arith.constant 0 : index
    %c0_17 = arith.constant 0 : index
    %25 = vector.load %arg2[%c0_16, %c0_17] : memref<1x128xf32, #tpu.memory_space<vmem>>, vector<1x128xf32>
    %26 = vector.broadcast %25 : vector<1x128xf32> to vector<256x128xf32>
    %27 = arith.mulf %24, %26 : vector<256x128xf32>
    %c0_18 = arith.constant 0 : index
    %c0_19 = arith.constant 0 : index
    %28 = vector.load %arg3[%c0_18, %c0_19] : memref<1x128xf32, #tpu.memory_space<vmem>>, vector<1x128xf32>
    %29 = vector.broadcast %28 : vector<1x128xf32> to vector<256x128xf32>
    %30 = arith.addf %27, %29 : vector<256x128xf32>
    %31 = arith.negf %30 : vector<256x128xf32>
    %32 = math.exp %31 : vector<256x128xf32>
    %cst_20 = arith.constant 1.000000e+00 : f32
    %33 = vector.broadcast %cst_20 : f32 to vector<256x128xf32>
    %34 = arith.addf %33, %32 : vector<256x128xf32>
    %35 = arith.divf %33, %34 : vector<256x128xf32>
    %36 = arith.mulf %30, %35 : vector<256x128xf32>
    %c0_21 = arith.constant 0 : index
    %c0_22 = arith.constant 0 : index
    %c0_23 = arith.constant 0 : index
    %37 = vector.load %arg6[%c0_21, %c0_22, %c0_23] : memref<1x256x128xf32, #tpu.memory_space<vmem>>, vector<1x256x128xf32>
    %38 = vector.shape_cast %37 : vector<1x256x128xf32> to vector<256x128xf32>
    %39 = vector.shape_cast %36 : vector<256x128xf32> to vector<1x256x128xf32>
    tpu.vector_store %arg6[%c0_21, %c0_22, %c0_23], %39 {strides = array<i32>} : memref<1x256x128xf32, #tpu.memory_space<vmem>>, vector<1x256x128xf32>,
    return
  }
  func.func @transform_0(%arg0: i32) -> (i32, i32, i32) {
    %c0_i32 = arith.constant 0 : i32
    %c0_i32_0 = arith.constant 0 : i32
    %c0_i32_1 = arith.constant 0 : i32
    return %arg0, %c0_i32, %c0_i32_0 : i32, i32, i32
  }
  func.func @transform_1(%arg0: i32) -> (i32, i32) {
    %c0_i32 = arith.constant 0 : i32
    %c0_i32_0 = arith.constant 0 : i32
    %c0_i32_1 = arith.constant 0 : i32
    return %c0_i32, %c0_i32_0 : i32, i32
  }
  func.func @transform_2(%arg0: i32) -> (i32, i32) {
    %c0_i32 = arith.constant 0 : i32
    %c0_i32_0 = arith.constant 0 : i32
    %c0_i32_1 = arith.constant 0 : i32
    return %c0_i32, %c0_i32_0 : i32, i32
  }
  func.func @transform_3(%arg0: i32) -> (i32, i32) {
    %c0_i32 = arith.constant 0 : i32
    %c0_i32_0 = arith.constant 0 : i32
    %c0_i32_1 = arith.constant 0 : i32
    return %c0_i32, %c0_i32_0 : i32, i32
  }
  func.func @transform_4(%arg0: i32) -> (i32, i32) {
    %c0_i32 = arith.constant 0 : i32
    %c0_i32_0 = arith.constant 0 : i32
    %c0_i32_1 = arith.constant 0 : i32
    return %c0_i32, %c0_i32_0 : i32, i32
  }
  func.func @transform_5(%arg0: i32) -> (i32, i32, i32) {
    %c0_i32 = arith.constant 0 : i32
    %c0_i32_0 = arith.constant 0 : i32
    %c0_i32_1 = arith.constant 0 : i32
    return %arg0, %c0_i32, %c0_i32_0 : i32, i32, i32
  }
}

</mosaic_0001>

<llo_original>
// kernel: tpu_custom_call.1
$region0: #{tpu_custom_call.1}
  #allocation0 [shape = 'u32[]', space=smem, size = 0x4, offset = 0x4, fixed_abs, tag = 'smem constant byte address 0x4 - core index']
  #allocation1 [shape = 'u32[144,128]{1,0:T(1,128)}', space=vmem, size = 0x12000, scoped, tag = 'internal scratch']
  %s0 = inlined_call_operand.hbm [shape: f32[2,256,128], index: 0, kind: input, shape index: {}]
  %s1 = inlined_call_operand.vmem [shape: f32[1,128], index: 1, kind: input, shape index: {}]
  %s2 = inlined_call_operand.vmem [shape: f32[1,128], index: 2, kind: input, shape index: {}]
  %s3 = inlined_call_operand.vmem [shape: f32[128,32], index: 3, kind: input, shape index: {}]
  %s4 = inlined_call_operand.vmem [shape: f32[32,128], index: 4, kind: input, shape index: {}]
  %s5 = inlined_call_operand.hbm [shape: f32[2,256,128], index: 5, kind: output, shape index: {}]
  %s6 = sld [smem:[#allocation0]]
  $region57: #{tpu_custom_call.1} parent=0
    _
  %s8 = ssub.s32 1, %s6
  %s9 = scalar_select 0, %s8, %s6
  $region1: #{tpu_custom_call.1} parent=0
    #allocation2 [shape = 'u8[262144]{0}', space=vmem, size = 0x40000, scoped, tag = 'input window, operand 0']
    #allocation3 [shape = 's32[2]{0}', space=sflag, size = 0x8, scoped, tag = 'scoped memory for tpu_custom_call.1']
    #allocation4 [shape = 's32[2]{0}', space=sflag, size = 0x8, scoped, tag = 'scoped memory for tpu_custom_call.1']
    #allocation5 [shape = 'u8[262144]{0}', space=vmem, size = 0x40000, scoped, tag = 'output window, operand 0']
    %10 = vsyncpa [#allocation3], 0
    %s11 = scalar_lea.sflag [#allocation3], 1
    %12 = vsyncpa %s11, 0
    %13 = vsyncpa [#allocation4], 0
    %s14 = scalar_lea.sflag [#allocation4], 1
    %15 = vsyncpa %s14, 0
    loop: start=0, step=1, limit=4
    $region2: #{tpu_custom_call.1} parent=1 // loop_pre_header
      _
    $region3: #{tpu_custom_call.1} parent=1 // loop_header
      %s17 = sphi 0, %s21
      %p18 = scmp.ge.s32.totalorder %s17, 4
      %s27 = sphi 0, %s29
      %s30 = sphi 0, %s27
      %s31 = sphi 0, %s30
      %s47 = sphi 0, %s31
      %s51 = sphi 0, %s51
      %s53 = sphi 0, %s51
      %s54 = sphi 0, %s53
      %s68 = sphi 0, %s54
      %s72 = sphi 0, %s72
      %s74 = sphi 0, %s72
      %s75 = sphi 0, %s74
      %s89 = sphi 0, %s75
      %s93 = sphi 0, %s93
      %s95 = sphi 0, %s93
      %s96 = sphi 0, %s95
      %s110 = sphi 0, %s96
      %s114 = sphi 0, %s114
      %s116 = sphi 0, %s114
      %s117 = sphi 0, %s116
      %s131 = sphi 0, %s117
      %s137 = sphi 0, %s139
      %s140 = sphi 0, %s137
      %s141 = sphi 0, %s140
      %s157 = sphi 0, %s141
    $region4: #{tpu_custom_call.1} parent=1 // loop_header_branch
      %20 = sbr.rel (%p18) target = $region8
    $region5: #{tpu_custom_call.1} parent=1 // loop_body
      %s22 = ssub.s32 %s17, 1
      %s23 = ssub.s32 %s17, 2
      %s24 = sadd.s32 %s17, 1
      %s25 = ssub.s32 %s17, %s24
      %p26 = scmp.eq.s32.totalorder %s25, 0
      %s28 = sadd.s32 %s27, 1
      %s29 = scalar_select %p26, %s27, %s28
      %p32 = pneg %p26
      %p33 = scmp.eq.s32.totalorder %s17, 1
      %p34 = por %p32, %p33
      %p35 = scmp.ne.s32.totalorder %s27, %s30
      %p36 = scmp.eq.s32.totalorder %s17, 0
      %p37 = por %p35, %p36
      %p38 = scmp.ne.s32.totalorder %s27, %s30
      %p39 = scmp.eq.s32.totalorder %s22, 1
      %p40 = por %p38, %p39
      %p41 = scmp.ne.s32.totalorder %s30, %s31
      %p42 = scmp.eq.s32.totalorder %s22, 0
      %p43 = por %p41, %p42
      %p44 = scmp.ne.s32.totalorder %s30, %s31
      %p45 = scmp.eq.s32.totalorder %s23, 1
      %p46 = por %p44, %p45
      %p48 = scmp.ne.s32.totalorder %s31, %s47
      %p49 = scmp.eq.s32.totalorder %s23, 0
      %p50 = por %p48, %p49
      %s52 = sadd.s32 %s51, 1
      %p55 = scmp.eq.s32.totalorder %s17, 1
      %p56 = scmp.ne.s32.totalorder %s51, %s53
      %p57 = scmp.eq.s32.totalorder %s17, 0
      %p58 = por %p56, %p57
      %p59 = scmp.ne.s32.totalorder %s51, %s53
      %p60 = scmp.eq.s32.totalorder %s22, 1
      %p61 = por %p59, %p60
      %p62 = scmp.ne.s32.totalorder %s53, %s54
      %p63 = scmp.eq.s32.totalorder %s22, 0
      %p64 = por %p62, %p63
      %p65 = scmp.ne.s32.totalorder %s53, %s54
      %p66 = scmp.eq.s32.totalorder %s23, 1
      %p67 = por %p65, %p66
      %p69 = scmp.ne.s32.totalorder %s54, %s68
      %p70 = scmp.eq.s32.totalorder %s23, 0
      %p71 = por %p69, %p70
      %s73 = sadd.s32 %s72, 1
      %p76 = scmp.eq.s32.totalorder %s17, 1
      %p77 = scmp.ne.s32.totalorder %s72, %s74
      %p78 = scmp.eq.s32.totalorder %s17, 0
      %p79 = por %p77, %p78
      %p80 = scmp.ne.s32.totalorder %s72, %s74
      %p81 = scmp.eq.s32.totalorder %s22, 1
      %p82 = por %p80, %p81
      %p83 = scmp.ne.s32.totalorder %s74, %s75
      %p84 = scmp.eq.s32.totalorder %s22, 0
      %p85 = por %p83, %p84
      %p86 = scmp.ne.s32.totalorder %s74, %s75
      %p87 = scmp.eq.s32.totalorder %s23, 1
      %p88 = por %p86, %p87
      %p90 = scmp.ne.s32.totalorder %s75, %s89
      %p91 = scmp.eq.s32.totalorder %s23, 0
      %p92 = por %p90, %p91
      %s94 = sadd.s32 %s93, 1
      %p97 = scmp.eq.s32.totalorder %s17, 1
      %p98 = scmp.ne.s32.totalorder %s93, %s95
      %p99 = scmp.eq.s32.totalorder %s17, 0
      %p100 = por %p98, %p99
      %p101 = scmp.ne.s32.totalorder %s93, %s95
      %p102 = scmp.eq.s32.totalorder %s22, 1
      %p103 = por %p101, %p102
      %p104 = scmp.ne.s32.totalorder %s95, %s96
      %p105 = scmp.eq.s32.totalorder %s22, 0
      %p106 = por %p104, %p105
      %p107 = scmp.ne.s32.totalorder %s95, %s96
      %p108 = scmp.eq.s32.totalorder %s23, 1
      %p109 = por %p107, %p108
      %p111 = scmp.ne.s32.totalorder %s96, %s110
      %p112 = scmp.eq.s32.totalorder %s23, 0
      %p113 = por %p111, %p112
      %s115 = sadd.s32 %s114, 1
      %p118 = scmp.eq.s32.totalorder %s17, 1
      %p119 = scmp.ne.s32.totalorder %s114, %s116
      %p120 = scmp.eq.s32.totalorder %s17, 0
      %p121 = por %p119, %p120
      %p122 = scmp.ne.s32.totalorder %s114, %s116
      %p123 = scmp.eq.s32.totalorder %s22, 1
      %p124 = por %p122, %p123
      %p125 = scmp.ne.s32.totalorder %s116, %s117
      %p126 = scmp.eq.s32.totalorder %s22, 0
      %p127 = por %p125, %p126
      %p128 = scmp.ne.s32.totalorder %s116, %s117
      %p129 = scmp.eq.s32.totalorder %s23, 1
      %p130 = por %p128, %p129
      %p132 = scmp.ne.s32.totalorder %s117, %s131
      %p133 = scmp.eq.s32.totalorder %s23, 0
      %p134 = por %p132, %p133
      %s135 = ssub.s32 %s17, %s24
      %p136 = scmp.eq.s32.totalorder %s135, 0
      %s138 = sadd.s32 %s137, 1
      %s139 = scalar_select %p136, %s137, %s138
      %p142 = pneg %p136
      %p143 = scmp.eq.s32.totalorder %s17, 1
      %p144 = por %p142, %p143
      %p145 = scmp.ne.s32.totalorder %s137, %s140
      %p146 = scmp.eq.s32.totalorder %s17, 0
      %p147 = por %p145, %p146
      %p148 = scmp.ne.s32.totalorder %s137, %s140
      %p149 = scmp.eq.s32.totalorder %s22, 1
      %p150 = por %p148, %p149
      %p151 = scmp.ne.s32.totalorder %s140, %s141
      %p152 = scmp.eq.s32.totalorder %s22, 0
      %p153 = por %p151, %p152
      %p154 = scmp.ne.s32.totalorder %s140, %s141
      %p155 = scmp.eq.s32.totalorder %s23, 1
      %p156 = por %p154, %p155
      %p158 = scmp.ne.s32.totalorder %s141, %s157
      %p159 = scmp.eq.s32.totalorder %s23, 0
      %p160 = por %p158, %p159
      %p161 = scmp.le.s32.totalorder 1, %s17
      %p162 = scmp.lt.s32.totalorder %s17, 3
      %p163 = pnand %p161, %p162
      %p164 = pneg %p163
      // Predicated region
      $region9: #{tpu_custom_call.1} parent=5 // pred_check
        _
      $region10: #{tpu_custom_call.1} parent=5 // pred_check_branch
        %166 = sbr.rel (%p163) target = $region12
      $region11: #{tpu_custom_call.1} parent=5 // pred_region
        %s167 = ssub.s32 %s17, 1
        // Predicated region
        $region13: #{tpu_custom_call.1} parent=11 // pred_check
          %p168 = pneg %p64
        $region14: #{tpu_custom_call.1} parent=11 // pred_check_branch
          %170 = sbr.rel (%p168) target = $region16
        $region15: #{tpu_custom_call.1} parent=11 // pred_region
          _
        $region16: #{tpu_custom_call.1} parent=11 // pred_fallthru
          _
        // Predicated region
        $region17: #{tpu_custom_call.1} parent=11 // pred_check
          %p171 = pneg %p85
        $region18: #{tpu_custom_call.1} parent=11 // pred_check_branch
          %173 = sbr.rel (%p171) target = $region20
        $region19: #{tpu_custom_call.1} parent=11 // pred_region
          _
        $region20: #{tpu_custom_call.1} parent=11 // pred_fallthru
          _
        // Predicated region
        $region21: #{tpu_custom_call.1} parent=11 // pred_check
          %p174 = pneg %p106
        $region22: #{tpu_custom_call.1} parent=11 // pred_check_branch
          %176 = sbr.rel (%p174) target = $region24
        $region23: #{tpu_custom_call.1} parent=11 // pred_region
          _
        $region24: #{tpu_custom_call.1} parent=11 // pred_fallthru
          _
        // Predicated region
        $region25: #{tpu_custom_call.1} parent=11 // pred_check
          %p177 = pneg %p127
        $region26: #{tpu_custom_call.1} parent=11 // pred_check_branch
          %179 = sbr.rel (%p177) target = $region28
        $region27: #{tpu_custom_call.1} parent=11 // pred_region
          _
        $region28: #{tpu_custom_call.1} parent=11 // pred_fallthru
          _
      $region12: #{tpu_custom_call.1} parent=5 // pred_fallthru
        _
      %p180 = scmp.lt.s32.totalorder %s17, 2
      // Predicated region
      $region29: #{tpu_custom_call.1} parent=5 // pred_check
        %p181 = pneg %p180
      $region30: #{tpu_custom_call.1} parent=5 // pred_check_branch
        %183 = sbr.rel (%p181) target = $region32
      $region31: #{tpu_custom_call.1} parent=5 // pred_region
        // Predicated region
        $region33: #{tpu_custom_call.1} parent=31 // pred_check
          %p184 = pneg %p37
        $region34: #{tpu_custom_call.1} parent=31 // pred_check_branch
          %186 = sbr.rel (%p184) target = $region36
        $region35: #{tpu_custom_call.1} parent=31 // pred_region
          %s187 = sand.u32 %s27, 1
          %s188 = scalar_lea.sflag [#allocation3], %s187
          %s189 = sand.u32 %s27, 1
          %s190 = smul.addr %s189, 256
          %s191 = scalar_lea.vmem [#allocation2], %s190
          %s193 = ssub.s32 4096, 4096
          %194 = vsyncadd %s188, %s193
          %s195 = smul.addr %s17, 32
          %s196 = smul.addr %s195, 128
          %s197 = scalar_lea.hbm %s0, %s196
          %s198 = sshll.u32 %s191, 4
          %s199 = int_to_ptr.vmem [resolvable:$true] %s198
          %204 = dma.hbm_to_vmem [thread:$0]  %s197, 4096, %s199, %s188, 128, 128, 8
        $region36: #{tpu_custom_call.1} parent=31 // pred_fallthru
          _
      $region32: #{tpu_custom_call.1} parent=5 // pred_fallthru
        _
      %p205 = scmp.le.s32.totalorder 1, %s17
      %p206 = scmp.lt.s32.totalorder %s17, 3
      %p207 = pnand %p205, %p206
      %p208 = pneg %p207
      // Predicated region
      $region37: #{tpu_custom_call.1} parent=5 // pred_check
        _
      $region38: #{tpu_custom_call.1} parent=5 // pred_check_branch
        %210 = sbr.rel (%p207) target = $region40
      $region39: #{tpu_custom_call.1} parent=5 // pred_region
        %s211 = ssub.s32 %s17, 1
        %s212 = sand.u32 %s30, 1
        %s213 = scalar_lea.sflag [#allocation3], %s212
        %s214 = sand.u32 %s30, 1
        %s215 = smul.addr %s214, 256
        %s216 = scalar_lea.vmem [#allocation2], %s215
        // Predicated region
        $region41: #{tpu_custom_call.1} parent=39 // pred_check
          %p217 = pneg %p43
        $region42: #{tpu_custom_call.1} parent=39 // pred_check_branch
          %219 = sbr.rel (%p217) target = $region44
        $region43: #{tpu_custom_call.1} parent=39 // pred_region
          %220 = dma.done %s213, 4096
        $region44: #{tpu_custom_call.1} parent=39 // pred_fallthru
          _
        %s221 = sand.u32 %s30, 1
        %s222 = scalar_lea.sflag [#allocation3], %s221
        %s223 = sand.u32 %s30, 1
        %s224 = smul.addr %s223, 256
        %s225 = scalar_lea.vmem [#allocation2], %s224
        %p226 = pneg %p43
        %p227 = pneg %p40
        %p228 = pneg %p64
        %p229 = pneg %p61
        %p230 = pneg %p85
        %p231 = pneg %p82
        %p232 = pneg %p106
        %p233 = pneg %p103
        %p234 = pneg %p127
        %p235 = pneg %p124
        %p236 = pneg %p153
        %p237 = pneg %p150
        %s238 = sand.u32 %s140, 1
        %s239 = scalar_lea.sflag [#allocation4], %s238
        %s240 = sand.u32 %s140, 1
        %s241 = smul.addr %s240, 256
        %s242 = scalar_lea.vmem [#allocation5], %s241
        %v243 = vld [vmem:[%s216] sm:$0xff]
        %v244 = vld [vmem:[%s216 + $0x8] sm:$0xff]
        %v245 = vld [vmem:[%s216 + $0x10] sm:$0xff]
        %v246 = vld [vmem:[%s216 + $0x18] sm:$0xff]
        %v247 = vld [vmem:[%s216 + $0x20] sm:$0xff]
        %v248 = vld [vmem:[%s216 + $0x28] sm:$0xff]
        %v249 = vld [vmem:[%s216 + $0x30] sm:$0xff]
        %v250 = vld [vmem:[%s216 + $0x38] sm:$0xff]
        %v251 = vld [vmem:[%s216 + $0x40] sm:$0xff]
        %v252 = vld [vmem:[%s216 + $0x48] sm:$0xff]
        %v253 = vld [vmem:[%s216 + $0x50] sm:$0xff]
        %v254 = vld [vmem:[%s216 + $0x58] sm:$0xff]
        %v255 = vld [vmem:[%s216 + $0x60] sm:$0xff]
        %v256 = vld [vmem:[%s216 + $0x68] sm:$0xff]
        %v257 = vld [vmem:[%s216 + $0x70] sm:$0xff]
        %v258 = vld [vmem:[%s216 + $0x78] sm:$0xff]
        %v259 = vld [vmem:[%s216 + $0x80] sm:$0xff]
        %v260 = vld [vmem:[%s216 + $0x88] sm:$0xff]
        %v261 = vld [vmem:[%s216 + $0x90] sm:$0xff]
        %v262 = vld [vmem:[%s216 + $0x98] sm:$0xff]
        %v263 = vld [vmem:[%s216 + $0xa0] sm:$0xff]
        %v264 = vld [vmem:[%s216 + $0xa8] sm:$0xff]
        %v265 = vld [vmem:[%s216 + $0xb0] sm:$0xff]
        %v266 = vld [vmem:[%s216 + $0xb8] sm:$0xff]
        %v267 = vld [vmem:[%s216 + $0xc0] sm:$0xff]
        %v268 = vld [vmem:[%s216 + $0xc8] sm:$0xff]
        %v269 = vld [vmem:[%s216 + $0xd0] sm:$0xff]
        %v270 = vld [vmem:[%s216 + $0xd8] sm:$0xff]
        %v271 = vld [vmem:[%s216 + $0xe0] sm:$0xff]
        %v272 = vld [vmem:[%s216 + $0xe8] sm:$0xff]
        %v273 = vld [vmem:[%s216 + $0xf0] sm:$0xff]
        %v274 = vld [vmem:[%s216 + $0xf8] sm:$0xff]
        %v275 = vld [vmem:[%s3] sm:$0xff]
        %v276 = vld [vmem:[%s3 + $0x8] sm:$0xff]
        %v277 = vld [vmem:[%s3 + $0x10] sm:$0xff]
        %v278 = vld [vmem:[%s3 + $0x18] sm:$0xff]
        %v279 = vld [vmem:[%s3 + $0x20] sm:$0xff]
        %v280 = vld [vmem:[%s3 + $0x28] sm:$0xff]
        %v281 = vld [vmem:[%s3 + $0x30] sm:$0xff]
        %v282 = vld [vmem:[%s3 + $0x38] sm:$0xff]
        %v283 = vld [vmem:[%s3 + $0x40] sm:$0xff]
        %v284 = vld [vmem:[%s3 + $0x48] sm:$0xff]
        %v285 = vld [vmem:[%s3 + $0x50] sm:$0xff]
        %v286 = vld [vmem:[%s3 + $0x58] sm:$0xff]
        %v287 = vld [vmem:[%s3 + $0x60] sm:$0xff]
        %v288 = vld [vmem:[%s3 + $0x68] sm:$0xff]
        %v289 = vld [vmem:[%s3 + $0x70] sm:$0xff]
        %v290 = vld [vmem:[%s3 + $0x78] sm:$0xff]
        %291 = vmatprep.subr.mxu0 0.0
        %292 = vmatpush1.msra.mxu0 %v290
        %293 = vmatprep.subr.mxu0 0.0
        %294 = vmatpush1.msra.mxu0 %v289
        %295 = vmatprep.subr.mxu0 0.0
        %296 = vmatpush1.msra.mxu0 %v288
        %297 = vmatprep.subr.mxu0 0.0
        %298 = vmatpush1.msra.mxu0 %v287
        %299 = vmatprep.subr.mxu0 0.0
        %300 = vmatpush1.msra.mxu0 %v286
        %301 = vmatprep.subr.mxu0 0.0
        %302 = vmatpush1.msra.mxu0 %v285
        %303 = vmatprep.subr.mxu0 0.0
        %304 = vmatpush1.msra.mxu0 %v284
        %305 = vmatprep.subr.mxu0 0.0
        %306 = vmatpush1.msra.mxu0 %v283
        %307 = vmatprep.subr.mxu0 0.0
        %308 = vmatpush1.msra.mxu0 %v282
        %309 = vmatprep.subr.mxu0 0.0
        %310 = vmatpush1.msra.mxu0 %v281
        %311 = vmatprep.subr.mxu0 0.0
        %312 = vmatpush1.msra.mxu0 %v280
        %313 = vmatprep.subr.mxu0 0.0
        %314 = vmatpush1.msra.mxu0 %v279
        %315 = vmatprep.subr.mxu0 0.0
        %316 = vmatpush1.msra.mxu0 %v278
        %317 = vmatprep.subr.mxu0 0.0
        %318 = vmatpush1.msra.mxu0 %v277
        %319 = vmatprep.subr.mxu0 0.0
        %320 = vmatpush1.msra.mxu0 %v276
        %321 = vmatprep.subr.mxu0 0.0
        %322 = vmatpush1.msra.mxu0 %v275
        %323 = vmatprep.subr.mxu0 0.0
        %324 = vmatpush2.msra.mxu0 0.0
        %325 = vmatprep.subr.mxu0 0.0
        %326 = vmatpush2.msra.mxu0 0.0
        %327 = vmatprep.subr.mxu0 0.0
        %328 = vmatpush2.msra.mxu0 0.0
        %329 = vmatprep.subr.mxu0 0.0
        %330 = vmatpush2.msra.mxu0 0.0
        %331 = vmatprep.subr.mxu0 0.0
        %332 = vmatpush2.msra.mxu0 0.0
        %333 = vmatprep.subr.mxu0 0.0
        %334 = vmatpush2.msra.mxu0 0.0
        %335 = vmatprep.subr.mxu0 0.0
        %336 = vmatpush2.msra.mxu0 0.0
        %337 = vmatprep.subr.mxu0 0.0
        %338 = vmatpush2.msra.mxu0 0.0
        %339 = vmatprep.subr.mxu0 0.0
        %340 = vmatpush2.msra.mxu0 0.0
        %341 = vmatprep.subr.mxu0 0.0
        %342 = vmatpush2.msra.mxu0 0.0
        %343 = vmatprep.subr.mxu0 0.0
        %344 = vmatpush2.msra.mxu0 0.0
        %345 = vmatprep.subr.mxu0 0.0
        %346 = vmatpush2.msra.mxu0 0.0
        %347 = vmatprep.subr.mxu0 0.0
        %348 = vmatpush2.msra.mxu0 0.0
        %349 = vmatprep.subr.mxu0 0.0
        %350 = vmatpush2.msra.mxu0 0.0
        %351 = vmatprep.subr.mxu0 0.0
        %352 = vmatpush2.msra.mxu0 0.0
        %353 = vmatprep.subr.mxu0 0.0
        %354 = vmatpush2.msra.mxu0 0.0
        %355 = vmatprep.mubr.f32.mxu0 0.0
        %356 = vmatmul.mubr.f32.gmra.mxu0 %v243
        %v357 = vpop.f32.mrf.mxu0
        %v358 = vadd.f32 0.0, %v357
        %v359 = vpop.f32.mrf.mxu0
        %360 = vmatprep.mubr.f32.mxu0 0.0
        %361 = vmatmul.mubr.f32.gmra.mxu0 %v244
        %v362 = vpop.f32.mrf.mxu0
        %v363 = vadd.f32 0.0, %v362
        %v364 = vpop.f32.mrf.mxu0
        %365 = vmatprep.mubr.f32.mxu0 0.0
        %366 = vmatmul.mubr.f32.gmra.mxu0 %v245
        %v367 = vpop.f32.mrf.mxu0
        %v368 = vadd.f32 0.0, %v367
        %v369 = vpop.f32.mrf.mxu0
        %370 = vmatprep.mubr.f32.mxu0 0.0
        %371 = vmatmul.mubr.f32.gmra.mxu0 %v246
        %v372 = vpop.f32.mrf.mxu0
        %v373 = vadd.f32 0.0, %v372
        %v374 = vpop.f32.mrf.mxu0
        %375 = vmatprep.mubr.f32.mxu0 0.0
        %376 = vmatmul.mubr.f32.gmra.mxu0 %v247
        %v377 = vpop.f32.mrf.mxu0
        %v378 = vadd.f32 0.0, %v377
        %v379 = vpop.f32.mrf.mxu0
        %380 = vmatprep.mubr.f32.mxu0 0.0
        %381 = vmatmul.mubr.f32.gmra.mxu0 %v248
        %v382 = vpop.f32.mrf.mxu0
        %v383 = vadd.f32 0.0, %v382
        %v384 = vpop.f32.mrf.mxu0
        %385 = vmatprep.mubr.f32.mxu0 0.0
        %386 = vmatmul.mubr.f32.gmra.mxu0 %v249
        %v387 = vpop.f32.mrf.mxu0
        %v388 = vadd.f32 0.0, %v387
        %v389 = vpop.f32.mrf.mxu0
        %390 = vmatprep.mubr.f32.mxu0 0.0
        %391 = vmatmul.mubr.f32.gmra.mxu0 %v250
        %v392 = vpop.f32.mrf.mxu0
        %v393 = vadd.f32 0.0, %v392
        %v394 = vpop.f32.mrf.mxu0
        %395 = vmatprep.mubr.f32.mxu0 0.0
        %396 = vmatmul.mubr.f32.gmra.mxu0 %v251
        %v397 = vpop.f32.mrf.mxu0
        %v398 = vadd.f32 0.0, %v397
        %v399 = vpop.f32.mrf.mxu0
        %400 = vmatprep.mubr.f32.mxu0 0.0
        %401 = vmatmul.mubr.f32.gmra.mxu0 %v252
        %v402 = vpop.f32.mrf.mxu0
        %v403 = vadd.f32 0.0, %v402
        %v404 = vpop.f32.mrf.mxu0
        %405 = vmatprep.mubr.f32.mxu0 0.0
        %406 = vmatmul.mubr.f32.gmra.mxu0 %v253
        %v407 = vpop.f32.mrf.mxu0
        %v408 = vadd.f32 0.0, %v407
        %v409 = vpop.f32.mrf.mxu0
        %410 = vmatprep.mubr.f32.mxu0 0.0
        %411 = vmatmul.mubr.f32.gmra.mxu0 %v254
        %v412 = vpop.f32.mrf.mxu0
        %v413 = vadd.f32 0.0, %v412
        %v414 = vpop.f32.mrf.mxu0
        %415 = vmatprep.mubr.f32.mxu0 0.0
        %416 = vmatmul.mubr.f32.gmra.mxu0 %v255
        %v417 = vpop.f32.mrf.mxu0
        %v418 = vadd.f32 0.0, %v417
        %v419 = vpop.f32.mrf.mxu0
        %420 = vmatprep.mubr.f32.mxu0 0.0
        %421 = vmatmul.mubr.f32.gmra.mxu0 %v256
        %v422 = vpop.f32.mrf.mxu0
        %v423 = vadd.f32 0.0, %v422
        %v424 = vpop.f32.mrf.mxu0
        %425 = vmatprep.mubr.f32.mxu0 0.0
        %426 = vmatmul.mubr.f32.gmra.mxu0 %v257
        %v427 = vpop.f32.mrf.mxu0
        %v428 = vadd.f32 0.0, %v427
        %v429 = vpop.f32.mrf.mxu0
        %430 = vmatprep.mubr.f32.mxu0 0.0
        %431 = vmatmul.mubr.f32.gmra.mxu0 %v258
        %v432 = vpop.f32.mrf.mxu0
        %v433 = vadd.f32 0.0, %v432
        %v434 = vpop.f32.mrf.mxu0
        %435 = vmatprep.mubr.f32.mxu0 0.0
        %436 = vmatmul.mubr.f32.gmra.mxu0 %v259
        %v437 = vpop.f32.mrf.mxu0
        %v438 = vadd.f32 0.0, %v437
        %v439 = vpop.f32.mrf.mxu0
        %440 = vmatprep.mubr.f32.mxu0 0.0
        %441 = vmatmul.mubr.f32.gmra.mxu0 %v260
        %v442 = vpop.f32.mrf.mxu0
        %v443 = vadd.f32 0.0, %v442
        %v444 = vpop.f32.mrf.mxu0
        %445 = vmatprep.mubr.f32.mxu0 0.0
        %446 = vmatmul.mubr.f32.gmra.mxu0 %v261
        %v447 = vpop.f32.mrf.mxu0
        %v448 = vadd.f32 0.0, %v447
        %v449 = vpop.f32.mrf.mxu0
        %450 = vmatprep.mubr.f32.mxu0 0.0
        %451 = vmatmul.mubr.f32.gmra.mxu0 %v262
        %v452 = vpop.f32.mrf.mxu0
        %v453 = vadd.f32 0.0, %v452
        %v454 = vpop.f32.mrf.mxu0
        %455 = vmatprep.mubr.f32.mxu0 0.0
        %456 = vmatmul.mubr.f32.gmra.mxu0 %v263
        %v457 = vpop.f32.mrf.mxu0
        %v458 = vadd.f32 0.0, %v457
        %v459 = vpop.f32.mrf.mxu0
        %460 = vmatprep.mubr.f32.mxu0 0.0
        %461 = vmatmul.mubr.f32.gmra.mxu0 %v264
        %v462 = vpop.f32.mrf.mxu0
        %v463 = vadd.f32 0.0, %v462
        %v464 = vpop.f32.mrf.mxu0
        %465 = vmatprep.mubr.f32.mxu0 0.0
        %466 = vmatmul.mubr.f32.gmra.mxu0 %v265
        %v467 = vpop.f32.mrf.mxu0
        %v468 = vadd.f32 0.0, %v467
        %v469 = vpop.f32.mrf.mxu0
        %470 = vmatprep.mubr.f32.mxu0 0.0
        %471 = vmatmul.mubr.f32.gmra.mxu0 %v266
        %v472 = vpop.f32.mrf.mxu0
        %v473 = vadd.f32 0.0, %v472
        %v474 = vpop.f32.mrf.mxu0
        %475 = vmatprep.mubr.f32.mxu0 0.0
        %476 = vmatmul.mubr.f32.gmra.mxu0 %v267
        %v477 = vpop.f32.mrf.mxu0
        %v478 = vadd.f32 0.0, %v477
        %v479 = vpop.f32.mrf.mxu0
        %480 = vmatprep.mubr.f32.mxu0 0.0
        %481 = vmatmul.mubr.f32.gmra.mxu0 %v268
        %v482 = vpop.f32.mrf.mxu0
        %v483 = vadd.f32 0.0, %v482
        %v484 = vpop.f32.mrf.mxu0
        %485 = vmatprep.mubr.f32.mxu0 0.0
        %486 = vmatmul.mubr.f32.gmra.mxu0 %v269
        %v487 = vpop.f32.mrf.mxu0
        %v488 = vadd.f32 0.0, %v487
        %v489 = vpop.f32.mrf.mxu0
        %490 = vmatprep.mubr.f32.mxu0 0.0
        %491 = vmatmul.mubr.f32.gmra.mxu0 %v270
        %v492 = vpop.f32.mrf.mxu0
        %v493 = vadd.f32 0.0, %v492
        %v494 = vpop.f32.mrf.mxu0
        %495 = vmatprep.mubr.f32.mxu0 0.0
        %496 = vmatmul.mubr.f32.gmra.mxu0 %v271
        %v497 = vpop.f32.mrf.mxu0
        %v498 = vadd.f32 0.0, %v497
        %v499 = vpop.f32.mrf.mxu0
        %500 = vmatprep.mubr.f32.mxu0 0.0
        %501 = vmatmul.mubr.f32.gmra.mxu0 %v272
        %v502 = vpop.f32.mrf.mxu0
        %v503 = vadd.f32 0.0, %v502
        %v504 = vpop.f32.mrf.mxu0
        %505 = vmatprep.mubr.f32.mxu0 0.0
        %506 = vmatmul.mubr.f32.gmra.mxu0 %v273
        %v507 = vpop.f32.mrf.mxu0
        %v508 = vadd.f32 0.0, %v507
        %v509 = vpop.f32.mrf.mxu0
        %510 = vmatprep.mubr.f32.mxu0 0.0
        %511 = vmatmul.mubr.f32.gmra.mxu0 %v274
        %v512 = vpop.f32.mrf.mxu0
        %v513 = vadd.f32 0.0, %v512
        %v514 = vpop.f32.mrf.mxu0
        %515 = vdwg.mxu0
        %vm516 = vcmask 261120
        %v517 = vsel %vm516, %v358, 0.0
        %v518 = vsel %vm516, %v363, 0.0
        %v519 = vadd.f32 %v517, %v518
        %v520 = vsel %vm516, %v368, 0.0
        %v521 = vadd.f32 %v519, %v520
        %v522 = vsel %vm516, %v373, 0.0
        %v523 = vadd.f32 %v521, %v522
        %v524 = vsel %vm516, %v378, 0.0
        %v525 = vadd.f32 %v523, %v524
        %v526 = vsel %vm516, %v383, 0.0
        %v527 = vadd.f32 %v525, %v526
        %v528 = vsel %vm516, %v388, 0.0
        %v529 = vadd.f32 %v527, %v528
        %v530 = vsel %vm516, %v393, 0.0
        %v531 = vadd.f32 %v529, %v530
        %v532 = vsel %vm516, %v398, 0.0
        %v533 = vadd.f32 %v531, %v532
        %v534 = vsel %vm516, %v403, 0.0
        %v535 = vadd.f32 %v533, %v534
        %v536 = vsel %vm516, %v408, 0.0
        %v537 = vadd.f32 %v535, %v536
        %v538 = vsel %vm516, %v413, 0.0
        %v539 = vadd.f32 %v537, %v538
        %v540 = vsel %vm516, %v418, 0.0
        %v541 = vadd.f32 %v539, %v540
        %v542 = vsel %vm516, %v423, 0.0
        %v543 = vadd.f32 %v541, %v542
        %v544 = vsel %vm516, %v428, 0.0
        %v545 = vadd.f32 %v543, %v544
        %v546 = vsel %vm516, %v433, 0.0
        %v547 = vadd.f32 %v545, %v546
        %v548 = vsel %vm516, %v438, 0.0
        %v549 = vadd.f32 %v547, %v548
        %v550 = vsel %vm516, %v443, 0.0
        %v551 = vadd.f32 %v549, %v550
        %v552 = vsel %vm516, %v448, 0.0
        %v553 = vadd.f32 %v551, %v552
        %v554 = vsel %vm516, %v453, 0.0
        %v555 = vadd.f32 %v553, %v554
        %v556 = vsel %vm516, %v458, 0.0
        %v557 = vadd.f32 %v555, %v556
        %v558 = vsel %vm516, %v463, 0.0
        %v559 = vadd.f32 %v557, %v558
        %v560 = vsel %vm516, %v468, 0.0
        %v561 = vadd.f32 %v559, %v560
        %v562 = vsel %vm516, %v473, 0.0
        %v563 = vadd.f32 %v561, %v562
        %v564 = vsel %vm516, %v478, 0.0
        %v565 = vadd.f32 %v563, %v564
        %v566 = vsel %vm516, %v483, 0.0
        %v567 = vadd.f32 %v565, %v566
        %v568 = vsel %vm516, %v488, 0.0
        %v569 = vadd.f32 %v567, %v568
        %v570 = vsel %vm516, %v493, 0.0
        %v571 = vadd.f32 %v569, %v570
        %v572 = vsel %vm516, %v498, 0.0
        %v573 = vadd.f32 %v571, %v572
        %v574 = vsel %vm516, %v503, 0.0
        %v575 = vadd.f32 %v573, %v574
        %v576 = vsel %vm516, %v508, 0.0
        %v577 = vadd.f32 %v575, %v576
        %v578 = vsel %vm516, %v513, 0.0
        %v579 = vadd.f32 %v577, %v578
        %v580 = vrot.slane %v579, 4
        %v581 = vadd.f32 %v579, %v580
        %v582 = vrot.slane %v581, 2
        %v583 = vadd.f32 %v581, %v582
        %v584 = vrot.slane %v583, 1
        %v585 = vadd.f32 %v583, %v584
        %v586 = vrcp.pop 1024.0
        %v587 = vmul.f32 %v585, %v586
        %v588 = vld [vmem:[%s4] sm:$0xff]
        %v589 = vld [vmem:[%s4 + $0x8] sm:$0xff]
        %v590 = vld [vmem:[%s4 + $0x10] sm:$0xff]
        %v591 = vld [vmem:[%s4 + $0x18] sm:$0xff]
        %v593 = vsel %vm516, %v587, 0
        %595 = vmatprep.subr.mxu0 0.0
        %596 = vmatpush1.msra.mxu0 0.0
        %597 = vmatprep.subr.mxu0 0.0
        %598 = vmatpush1.msra.mxu0 0.0
        %599 = vmatprep.subr.mxu0 0.0
        %600 = vmatpush1.msra.mxu0 0.0
        %601 = vmatprep.subr.mxu0 0.0
        %602 = vmatpush1.msra.mxu0 0.0
        %603 = vmatprep.subr.mxu0 0.0
        %604 = vmatpush1.msra.mxu0 0.0
        %605 = vmatprep.subr.mxu0 0.0
        %606 = vmatpush1.msra.mxu0 0.0
        %607 = vmatprep.subr.mxu0 0.0
        %608 = vmatpush1.msra.mxu0 0.0
        %609 = vmatprep.subr.mxu0 0.0
        %610 = vmatpush1.msra.mxu0 0.0
        %611 = vmatprep.subr.mxu0 0.0
        %612 = vmatpush1.msra.mxu0 0.0
        %613 = vmatprep.subr.mxu0 0.0
        %614 = vmatpush1.msra.mxu0 0.0
        %615 = vmatprep.subr.mxu0 0.0
        %616 = vmatpush1.msra.mxu0 0.0
        %617 = vmatprep.subr.mxu0 0.0
        %618 = vmatpush1.msra.mxu0 0.0
        %619 = vmatprep.subr.mxu0 0.0
        %620 = vmatpush1.msra.mxu0 %v591
        %621 = vmatprep.subr.mxu0 0.0
        %622 = vmatpush1.msra.mxu0 %v590
        %623 = vmatprep.subr.mxu0 0.0
        %624 = vmatpush1.msra.mxu0 %v589
        %625 = vmatprep.subr.mxu0 0.0
        %626 = vmatpush1.msra.mxu0 %v588
        %627 = vmatprep.subr.mxu0 0.0
        %628 = vmatpush2.msra.mxu0 0.0
        %629 = vmatprep.subr.mxu0 0.0
        %630 = vmatpush2.msra.mxu0 0.0
        %631 = vmatprep.subr.mxu0 0.0
        %632 = vmatpush2.msra.mxu0 0.0
        %633 = vmatprep.subr.mxu0 0.0
        %634 = vmatpush2.msra.mxu0 0.0
        %635 = vmatprep.subr.mxu0 0.0
        %636 = vmatpush2.msra.mxu0 0.0
        %637 = vmatprep.subr.mxu0 0.0
        %638 = vmatpush2.msra.mxu0 0.0
        %639 = vmatprep.subr.mxu0 0.0
        %640 = vmatpush2.msra.mxu0 0.0
        %641 = vmatprep.subr.mxu0 0.0
        %642 = vmatpush2.msra.mxu0 0.0
        %643 = vmatprep.subr.mxu0 0.0
        %644 = vmatpush2.msra.mxu0 0.0
        %645 = vmatprep.subr.mxu0 0.0
        %646 = vmatpush2.msra.mxu0 0.0
        %647 = vmatprep.subr.mxu0 0.0
        %648 = vmatpush2.msra.mxu0 0.0
        %649 = vmatprep.subr.mxu0 0.0
        %650 = vmatpush2.msra.mxu0 0.0
        %651 = vmatprep.subr.mxu0 0.0
        %652 = vmatpush2.msra.mxu0 0.0
        %653 = vmatprep.subr.mxu0 0.0
        %654 = vmatpush2.msra.mxu0 0.0
        %655 = vmatprep.subr.mxu0 0.0
        %656 = vmatpush2.msra.mxu0 0.0
        %657 = vmatprep.subr.mxu0 0.0
        %658 = vmatpush2.msra.mxu0 0.0
        %659 = vmatprep.mubr.f32.mxu0 0.0
        %660 = vmatmul.mubr.f32.gmra.mxu0 %v593
        %v661 = vpop.f32.mrf.mxu0
        %v662 = vadd.f32 0.0, %v661
        %v663 = vpop.f32.mrf.mxu0
        %664 = vdwg.mxu0
        %v665 = vlaneseq
        %v666 = vshrl.u32 %v665, 7
        %v667 = vsub.s32 0, %v666
        %v668 = vrot.slane %v662, %v667
        %v669 = vsub.f32 %v243, %v668
        %v670 = vsub.f32 %v244, %v668
        %v671 = vsub.f32 %v245, %v668
        %v672 = vsub.f32 %v246, %v668
        %v673 = vsub.f32 %v247, %v668
        %v674 = vsub.f32 %v248, %v668
        %v675 = vsub.f32 %v249, %v668
        %v676 = vsub.f32 %v250, %v668
        %v677 = vsub.f32 %v251, %v668
        %v678 = vsub.f32 %v252, %v668
        %v679 = vsub.f32 %v253, %v668
        %v680 = vsub.f32 %v254, %v668
        %v681 = vsub.f32 %v255, %v668
        %v682 = vsub.f32 %v256, %v668
        %v683 = vsub.f32 %v257, %v668
        %v684 = vsub.f32 %v258, %v668
        %v685 = vsub.f32 %v259, %v668
        %v686 = vsub.f32 %v260, %v668
        %v687 = vsub.f32 %v261, %v668
        %v688 = vsub.f32 %v262, %v668
        %v689 = vsub.f32 %v263, %v668
        %v690 = vsub.f32 %v264, %v668
        %v691 = vsub.f32 %v265, %v668
        %v692 = vsub.f32 %v266, %v668
        %v693 = vsub.f32 %v267, %v668
        %v694 = vsub.f32 %v268, %v668
        %v695 = vsub.f32 %v269, %v668
        %v696 = vsub.f32 %v270, %v668
        %v697 = vsub.f32 %v271, %v668
        %v698 = vsub.f32 %v272, %v668
        %v699 = vsub.f32 %v273, %v668
        %v700 = vsub.f32 %v274, %v668
        %v701 = vmul.f32 %v669, %v669
        %v702 = vmul.f32 %v670, %v670
        %v703 = vmul.f32 %v671, %v671
        %v704 = vmul.f32 %v672, %v672
        %v705 = vmul.f32 %v673, %v673
        %v706 = vmul.f32 %v674, %v674
        %v707 = vmul.f32 %v675, %v675
        %v708 = vmul.f32 %v676, %v676
        %v709 = vmul.f32 %v677, %v677
        %v710 = vmul.f32 %v678, %v678
        %v711 = vmul.f32 %v679, %v679
        %v712 = vmul.f32 %v680, %v680
        %v713 = vmul.f32 %v681, %v681
        %v714 = vmul.f32 %v682, %v682
        %v715 = vmul.f32 %v683, %v683
        %v716 = vmul.f32 %v684, %v684
        %v717 = vmul.f32 %v685, %v685
        %v718 = vmul.f32 %v686, %v686
        %v719 = vmul.f32 %v687, %v687
        %v720 = vmul.f32 %v688, %v688
        %v721 = vmul.f32 %v689, %v689
        %v722 = vmul.f32 %v690, %v690
        %v723 = vmul.f32 %v691, %v691
        %v724 = vmul.f32 %v692, %v692
        %v725 = vmul.f32 %v693, %v693
        %v726 = vmul.f32 %v694, %v694
        %v727 = vmul.f32 %v695, %v695
        %v728 = vmul.f32 %v696, %v696
        %v729 = vmul.f32 %v697, %v697
        %v730 = vmul.f32 %v698, %v698
        %v731 = vmul.f32 %v699, %v699
        %v732 = vmul.f32 %v700, %v700
        %733 = vmatprep.subr.mxu0 0.0
        %734 = vmatpush1.msra.mxu0 %v290
        %735 = vmatprep.subr.mxu0 0.0
        %736 = vmatpush1.msra.mxu0 %v289
        %737 = vmatprep.subr.mxu0 0.0
        %738 = vmatpush1.msra.mxu0 %v288
        %739 = vmatprep.subr.mxu0 0.0
        %740 = vmatpush1.msra.mxu0 %v287
        %741 = vmatprep.subr.mxu0 0.0
        %742 = vmatpush1.msra.mxu0 %v286
        %743 = vmatprep.subr.mxu0 0.0
        %744 = vmatpush1.msra.mxu0 %v285
        %745 = vmatprep.subr.mxu0 0.0
        %746 = vmatpush1.msra.mxu0 %v284
        %747 = vmatprep.subr.mxu0 0.0
        %748 = vmatpush1.msra.mxu0 %v283
        %749 = vmatprep.subr.mxu0 0.0
        %750 = vmatpush1.msra.mxu0 %v282
        %751 = vmatprep.subr.mxu0 0.0
        %752 = vmatpush1.msra.mxu0 %v281
        %753 = vmatprep.subr.mxu0 0.0
        %754 = vmatpush1.msra.mxu0 %v280
        %755 = vmatprep.subr.mxu0 0.0
        %756 = vmatpush1.msra.mxu0 %v279
        %757 = vmatprep.subr.mxu0 0.0
        %758 = vmatpush1.msra.mxu0 %v278
        %759 = vmatprep.subr.mxu0 0.0
        %760 = vmatpush1.msra.mxu0 %v277
        %761 = vmatprep.subr.mxu0 0.0
        %762 = vmatpush1.msra.mxu0 %v276
        %763 = vmatprep.subr.mxu0 0.0
        %764 = vmatpush1.msra.mxu0 %v275
        %765 = vmatprep.subr.mxu0 0.0
        %766 = vmatpush2.msra.mxu0 0.0
        %767 = vmatprep.subr.mxu0 0.0
        %768 = vmatpush2.msra.mxu0 0.0
        %769 = vmatprep.subr.mxu0 0.0
        %770 = vmatpush2.msra.mxu0 0.0
        %771 = vmatprep.subr.mxu0 0.0
        %772 = vmatpush2.msra.mxu0 0.0
        %773 = vmatprep.subr.mxu0 0.0
        %774 = vmatpush2.msra.mxu0 0.0
        %775 = vmatprep.subr.mxu0 0.0
        %776 = vmatpush2.msra.mxu0 0.0
        %777 = vmatprep.subr.mxu0 0.0
        %778 = vmatpush2.msra.mxu0 0.0
        %779 = vmatprep.subr.mxu0 0.0
        %780 = vmatpush2.msra.mxu0 0.0
        %781 = vmatprep.subr.mxu0 0.0
        %782 = vmatpush2.msra.mxu0 0.0
        %783 = vmatprep.subr.mxu0 0.0
        %784 = vmatpush2.msra.mxu0 0.0
        %785 = vmatprep.subr.mxu0 0.0
        %786 = vmatpush2.msra.mxu0 0.0
        %787 = vmatprep.subr.mxu0 0.0
        %788 = vmatpush2.msra.mxu0 0.0
        %789 = vmatprep.subr.mxu0 0.0
        %790 = vmatpush2.msra.mxu0 0.0
        %791 = vmatprep.subr.mxu0 0.0
        %792 = vmatpush2.msra.mxu0 0.0
        %793 = vmatprep.subr.mxu0 0.0
        %794 = vmatpush2.msra.mxu0 0.0
        %795 = vmatprep.subr.mxu0 0.0
        %796 = vmatpush2.msra.mxu0 0.0
        %797 = vmatprep.mubr.f32.mxu0 0.0
        %798 = vmatmul.mubr.f32.gmra.mxu0 %v701
        %v799 = vpop.f32.mrf.mxu0
        %v800 = vadd.f32 0.0, %v799
        %v801 = vpop.f32.mrf.mxu0
        %802 = vmatprep.mubr.f32.mxu0 0.0
        %803 = vmatmul.mubr.f32.gmra.mxu0 %v702
        %v804 = vpop.f32.mrf.mxu0
        %v805 = vadd.f32 0.0, %v804
        %v806 = vpop.f32.mrf.mxu0
        %807 = vmatprep.mubr.f32.mxu0 0.0
        %808 = vmatmul.mubr.f32.gmra.mxu0 %v703
        %v809 = vpop.f32.mrf.mxu0
        %v810 = vadd.f32 0.0, %v809
        %v811 = vpop.f32.mrf.mxu0
        %812 = vmatprep.mubr.f32.mxu0 0.0
        %813 = vmatmul.mubr.f32.gmra.mxu0 %v704
        %v814 = vpop.f32.mrf.mxu0
        %v815 = vadd.f32 0.0, %v814
        %v816 = vpop.f32.mrf.mxu0
        %817 = vmatprep.mubr.f32.mxu0 0.0
        %818 = vmatmul.mubr.f32.gmra.mxu0 %v705
        %v819 = vpop.f32.mrf.mxu0
        %v820 = vadd.f32 0.0, %v819
        %v821 = vpop.f32.mrf.mxu0
        %822 = vmatprep.mubr.f32.mxu0 0.0
        %823 = vmatmul.mubr.f32.gmra.mxu0 %v706
        %v824 = vpop.f32.mrf.mxu0
        %v825 = vadd.f32 0.0, %v824
        %v826 = vpop.f32.mrf.mxu0
        %827 = vmatprep.mubr.f32.mxu0 0.0
        %828 = vmatmul.mubr.f32.gmra.mxu0 %v707
        %v829 = vpop.f32.mrf.mxu0
        %v830 = vadd.f32 0.0, %v829
        %v831 = vpop.f32.mrf.mxu0
        %832 = vmatprep.mubr.f32.mxu0 0.0
        %833 = vmatmul.mubr.f32.gmra.mxu0 %v708
        %v834 = vpop.f32.mrf.mxu0
        %v835 = vadd.f32 0.0, %v834
        %v836 = vpop.f32.mrf.mxu0
        %837 = vmatprep.mubr.f32.mxu0 0.0
        %838 = vmatmul.mubr.f32.gmra.mxu0 %v709
        %v839 = vpop.f32.mrf.mxu0
        %v840 = vadd.f32 0.0, %v839
        %v841 = vpop.f32.mrf.mxu0
        %842 = vmatprep.mubr.f32.mxu0 0.0
        %843 = vmatmul.mubr.f32.gmra.mxu0 %v710
        %v844 = vpop.f32.mrf.mxu0
        %v845 = vadd.f32 0.0, %v844
        %v846 = vpop.f32.mrf.mxu0
        %847 = vmatprep.mubr.f32.mxu0 0.0
        %848 = vmatmul.mubr.f32.gmra.mxu0 %v711
        %v849 = vpop.f32.mrf.mxu0
        %v850 = vadd.f32 0.0, %v849
        %v851 = vpop.f32.mrf.mxu0
        %852 = vmatprep.mubr.f32.mxu0 0.0
        %853 = vmatmul.mubr.f32.gmra.mxu0 %v712
        %v854 = vpop.f32.mrf.mxu0
        %v855 = vadd.f32 0.0, %v854
        %v856 = vpop.f32.mrf.mxu0
        %857 = vmatprep.mubr.f32.mxu0 0.0
        %858 = vmatmul.mubr.f32.gmra.mxu0 %v713
        %v859 = vpop.f32.mrf.mxu0
        %v860 = vadd.f32 0.0, %v859
        %v861 = vpop.f32.mrf.mxu0
        %862 = vmatprep.mubr.f32.mxu0 0.0
        %863 = vmatmul.mubr.f32.gmra.mxu0 %v714
        %v864 = vpop.f32.mrf.mxu0
        %v865 = vadd.f32 0.0, %v864
        %v866 = vpop.f32.mrf.mxu0
        %867 = vmatprep.mubr.f32.mxu0 0.0
        %868 = vmatmul.mubr.f32.gmra.mxu0 %v715
        %v869 = vpop.f32.mrf.mxu0
        %v870 = vadd.f32 0.0, %v869
        %v871 = vpop.f32.mrf.mxu0
        %872 = vmatprep.mubr.f32.mxu0 0.0
        %873 = vmatmul.mubr.f32.gmra.mxu0 %v716
        %v874 = vpop.f32.mrf.mxu0
        %v875 = vadd.f32 0.0, %v874
        %v876 = vpop.f32.mrf.mxu0
        %877 = vmatprep.mubr.f32.mxu0 0.0
        %878 = vmatmul.mubr.f32.gmra.mxu0 %v717
        %v879 = vpop.f32.mrf.mxu0
        %v880 = vadd.f32 0.0, %v879
        %v881 = vpop.f32.mrf.mxu0
        %882 = vmatprep.mubr.f32.mxu0 0.0
        %883 = vmatmul.mubr.f32.gmra.mxu0 %v718
        %v884 = vpop.f32.mrf.mxu0
        %v885 = vadd.f32 0.0, %v884
        %v886 = vpop.f32.mrf.mxu0
        %887 = vmatprep.mubr.f32.mxu0 0.0
        %888 = vmatmul.mubr.f32.gmra.mxu0 %v719
        %v889 = vpop.f32.mrf.mxu0
        %v890 = vadd.f32 0.0, %v889
        %v891 = vpop.f32.mrf.mxu0
        %892 = vmatprep.mubr.f32.mxu0 0.0
        %893 = vmatmul.mubr.f32.gmra.mxu0 %v720
        %v894 = vpop.f32.mrf.mxu0
        %v895 = vadd.f32 0.0, %v894
        %v896 = vpop.f32.mrf.mxu0
        %897 = vmatprep.mubr.f32.mxu0 0.0
        %898 = vmatmul.mubr.f32.gmra.mxu0 %v721
        %v899 = vpop.f32.mrf.mxu0
        %v900 = vadd.f32 0.0, %v899
        %v901 = vpop.f32.mrf.mxu0
        %902 = vmatprep.mubr.f32.mxu0 0.0
        %903 = vmatmul.mubr.f32.gmra.mxu0 %v722
        %v904 = vpop.f32.mrf.mxu0
        %v905 = vadd.f32 0.0, %v904
        %v906 = vpop.f32.mrf.mxu0
        %907 = vmatprep.mubr.f32.mxu0 0.0
        %908 = vmatmul.mubr.f32.gmra.mxu0 %v723
        %v909 = vpop.f32.mrf.mxu0
        %v910 = vadd.f32 0.0, %v909
        %v911 = vpop.f32.mrf.mxu0
        %912 = vmatprep.mubr.f32.mxu0 0.0
        %913 = vmatmul.mubr.f32.gmra.mxu0 %v724
        %v914 = vpop.f32.mrf.mxu0
        %v915 = vadd.f32 0.0, %v914
        %v916 = vpop.f32.mrf.mxu0
        %917 = vmatprep.mubr.f32.mxu0 0.0
        %918 = vmatmul.mubr.f32.gmra.mxu0 %v725
        %v919 = vpop.f32.mrf.mxu0
        %v920 = vadd.f32 0.0, %v919
        %v921 = vpop.f32.mrf.mxu0
        %922 = vmatprep.mubr.f32.mxu0 0.0
        %923 = vmatmul.mubr.f32.gmra.mxu0 %v726
        %v924 = vpop.f32.mrf.mxu0
        %v925 = vadd.f32 0.0, %v924
        %v926 = vpop.f32.mrf.mxu0
        %927 = vmatprep.mubr.f32.mxu0 0.0
        %928 = vmatmul.mubr.f32.gmra.mxu0 %v727
        %v929 = vpop.f32.mrf.mxu0
        %v930 = vadd.f32 0.0, %v929
        %v931 = vpop.f32.mrf.mxu0
        %932 = vmatprep.mubr.f32.mxu0 0.0
        %933 = vmatmul.mubr.f32.gmra.mxu0 %v728
        %v934 = vpop.f32.mrf.mxu0
        %v935 = vadd.f32 0.0, %v934
        %v936 = vpop.f32.mrf.mxu0
        %937 = vmatprep.mubr.f32.mxu0 0.0
        %938 = vmatmul.mubr.f32.gmra.mxu0 %v729
        %v939 = vpop.f32.mrf.mxu0
        %v940 = vadd.f32 0.0, %v939
        %v941 = vpop.f32.mrf.mxu0
        %942 = vmatprep.mubr.f32.mxu0 0.0
        %943 = vmatmul.mubr.f32.gmra.mxu0 %v730
        %v944 = vpop.f32.mrf.mxu0
        %v945 = vadd.f32 0.0, %v944
        %v946 = vpop.f32.mrf.mxu0
        %947 = vmatprep.mubr.f32.mxu0 0.0
        %948 = vmatmul.mubr.f32.gmra.mxu0 %v731
        %v949 = vpop.f32.mrf.mxu0
        %v950 = vadd.f32 0.0, %v949
        %v951 = vpop.f32.mrf.mxu0
        %952 = vmatprep.mubr.f32.mxu0 0.0
        %953 = vmatmul.mubr.f32.gmra.mxu0 %v732
        %v954 = vpop.f32.mrf.mxu0
        %v955 = vadd.f32 0.0, %v954
        %v956 = vpop.f32.mrf.mxu0
        %957 = vdwg.mxu0
        %v958 = vsel %vm516, %v800, 0.0
        %v959 = vsel %vm516, %v805, 0.0
        %v960 = vadd.f32 %v958, %v959
        %v961 = vsel %vm516, %v810, 0.0
        %v962 = vadd.f32 %v960, %v961
        %v963 = vsel %vm516, %v815, 0.0
        %v964 = vadd.f32 %v962, %v963
        %v965 = vsel %vm516, %v820, 0.0
        %v966 = vadd.f32 %v964, %v965
        %v967 = vsel %vm516, %v825, 0.0
        %v968 = vadd.f32 %v966, %v967
        %v969 = vsel %vm516, %v830, 0.0
        %v970 = vadd.f32 %v968, %v969
        %v971 = vsel %vm516, %v835, 0.0
        %v972 = vadd.f32 %v970, %v971
        %v973 = vsel %vm516, %v840, 0.0
        %v974 = vadd.f32 %v972, %v973
        %v975 = vsel %vm516, %v845, 0.0
        %v976 = vadd.f32 %v974, %v975
        %v977 = vsel %vm516, %v850, 0.0
        %v978 = vadd.f32 %v976, %v977
        %v979 = vsel %vm516, %v855, 0.0
        %v980 = vadd.f32 %v978, %v979
        %v981 = vsel %vm516, %v860, 0.0
        %v982 = vadd.f32 %v980, %v981
        %v983 = vsel %vm516, %v865, 0.0
        %v984 = vadd.f32 %v982, %v983
        %v985 = vsel %vm516, %v870, 0.0
        %v986 = vadd.f32 %v984, %v985
        %v987 = vsel %vm516, %v875, 0.0
        %v988 = vadd.f32 %v986, %v987
        %v989 = vsel %vm516, %v880, 0.0
        %v990 = vadd.f32 %v988, %v989
        %v991 = vsel %vm516, %v885, 0.0
        %v992 = vadd.f32 %v990, %v991
        %v993 = vsel %vm516, %v890, 0.0
        %v994 = vadd.f32 %v992, %v993
        %v995 = vsel %vm516, %v895, 0.0
        %v996 = vadd.f32 %v994, %v995
        %v997 = vsel %vm516, %v900, 0.0
        %v998 = vadd.f32 %v996, %v997
        %v999 = vsel %vm516, %v905, 0.0
        %v1000 = vadd.f32 %v998, %v999
        %v1001 = vsel %vm516, %v910, 0.0
        %v1002 = vadd.f32 %v1000, %v1001
        %v1003 = vsel %vm516, %v915, 0.0
        %v1004 = vadd.f32 %v1002, %v1003
        %v1005 = vsel %vm516, %v920, 0.0
        %v1006 = vadd.f32 %v1004, %v1005
        %v1007 = vsel %vm516, %v925, 0.0
        %v1008 = vadd.f32 %v1006, %v1007
        %v1009 = vsel %vm516, %v930, 0.0
        %v1010 = vadd.f32 %v1008, %v1009
        %v1011 = vsel %vm516, %v935, 0.0
        %v1012 = vadd.f32 %v1010, %v1011
        %v1013 = vsel %vm516, %v940, 0.0
        %v1014 = vadd.f32 %v1012, %v1013
        %v1015 = vsel %vm516, %v945, 0.0
        %v1016 = vadd.f32 %v1014, %v1015
        %v1017 = vsel %vm516, %v950, 0.0
        %v1018 = vadd.f32 %v1016, %v1017
        %v1019 = vsel %vm516, %v955, 0.0
        %v1020 = vadd.f32 %v1018, %v1019
        %v1021 = vrot.slane %v1020, 4
        %v1022 = vadd.f32 %v1020, %v1021
        %v1023 = vrot.slane %v1022, 2
        %v1024 = vadd.f32 %v1022, %v1023
        %v1025 = vrot.slane %v1024, 1
        %v1026 = vadd.f32 %v1024, %v1025
        %v1027 = vmul.f32 %v1026, %v586
        %v1028 = vadd.f32 %v1027, 1e-05
        %v1029 = vrsqrt.pop %v1028
        %v1031 = vsel %vm516, %v1029, 0
        %1033 = vmatprep.subr.mxu0 0.0
        %1034 = vmatpush1.msra.mxu0 0.0
        %1035 = vmatprep.subr.mxu0 0.0
        %1036 = vmatpush1.msra.mxu0 0.0
        %1037 = vmatprep.subr.mxu0 0.0
        %1038 = vmatpush1.msra.mxu0 0.0
        %1039 = vmatprep.subr.mxu0 0.0
        %1040 = vmatpush1.msra.mxu0 0.0
        %1041 = vmatprep.subr.mxu0 0.0
        %1042 = vmatpush1.msra.mxu0 0.0
        %1043 = vmatprep.subr.mxu0 0.0
        %1044 = vmatpush1.msra.mxu0 0.0
        %1045 = vmatprep.subr.mxu0 0.0
        %1046 = vmatpush1.msra.mxu0 0.0
        %1047 = vmatprep.subr.mxu0 0.0
        %1048 = vmatpush1.msra.mxu0 0.0
        %1049 = vmatprep.subr.mxu0 0.0
        %1050 = vmatpush1.msra.mxu0 0.0
        %1051 = vmatprep.subr.mxu0 0.0
        %1052 = vmatpush1.msra.mxu0 0.0
        %1053 = vmatprep.subr.mxu0 0.0
        %1054 = vmatpush1.msra.mxu0 0.0
        %1055 = vmatprep.subr.mxu0 0.0
        %1056 = vmatpush1.msra.mxu0 0.0
        %1057 = vmatprep.subr.mxu0 0.0
        %1058 = vmatpush1.msra.mxu0 %v591
        %1059 = vmatprep.subr.mxu0 0.0
        %1060 = vmatpush1.msra.mxu0 %v590
        %1061 = vmatprep.subr.mxu0 0.0
        %1062 = vmatpush1.msra.mxu0 %v589
        %1063 = vmatprep.subr.mxu0 0.0
        %1064 = vmatpush1.msra.mxu0 %v588
        %1065 = vmatprep.subr.mxu0 0.0
        %1066 = vmatpush2.msra.mxu0 0.0
        %1067 = vmatprep.subr.mxu0 0.0
        %1068 = vmatpush2.msra.mxu0 0.0
        %1069 = vmatprep.subr.mxu0 0.0
        %1070 = vmatpush2.msra.mxu0 0.0
        %1071 = vmatprep.subr.mxu0 0.0
        %1072 = vmatpush2.msra.mxu0 0.0
        %1073 = vmatprep.subr.mxu0 0.0
        %1074 = vmatpush2.msra.mxu0 0.0
        %1075 = vmatprep.subr.mxu0 0.0
        %1076 = vmatpush2.msra.mxu0 0.0
        %1077 = vmatprep.subr.mxu0 0.0
        %1078 = vmatpush2.msra.mxu0 0.0
        %1079 = vmatprep.subr.mxu0 0.0
        %1080 = vmatpush2.msra.mxu0 0.0
        %1081 = vmatprep.subr.mxu0 0.0
        %1082 = vmatpush2.msra.mxu0 0.0
        %1083 = vmatprep.subr.mxu0 0.0
        %1084 = vmatpush2.msra.mxu0 0.0
        %1085 = vmatprep.subr.mxu0 0.0
        %1086 = vmatpush2.msra.mxu0 0.0
        %1087 = vmatprep.subr.mxu0 0.0
        %1088 = vmatpush2.msra.mxu0 0.0
        %1089 = vmatprep.subr.mxu0 0.0
        %1090 = vmatpush2.msra.mxu0 0.0
        %1091 = vmatprep.subr.mxu0 0.0
        %1092 = vmatpush2.msra.mxu0 0.0
        %1093 = vmatprep.subr.mxu0 0.0
        %1094 = vmatpush2.msra.mxu0 0.0
        %1095 = vmatprep.subr.mxu0 0.0
        %1096 = vmatpush2.msra.mxu0 0.0
        %1097 = vmatprep.mubr.f32.mxu0 0.0
        %1098 = vmatmul.mubr.f32.gmra.mxu0 %v1031
        %v1099 = vpop.f32.mrf.mxu0
        %v1100 = vadd.f32 0.0, %v1099
        %v1101 = vpop.f32.mrf.mxu0
        %1102 = vdwg.mxu0
        %v1103 = vlaneseq
        %v1104 = vshrl.u32 %v1103, 7
        %v1105 = vsub.s32 0, %v1104
        %v1106 = vrot.slane %v1100, %v1105
        %v1107 = vmul.f32 %v669, %v1106
        %v1108 = vmul.f32 %v670, %v1106
        %v1109 = vmul.f32 %v671, %v1106
        %v1110 = vmul.f32 %v672, %v1106
        %v1111 = vmul.f32 %v673, %v1106
        %v1112 = vmul.f32 %v674, %v1106
        %v1113 = vmul.f32 %v675, %v1106
        %v1114 = vmul.f32 %v676, %v1106
        %v1115 = vmul.f32 %v677, %v1106
        %v1116 = vmul.f32 %v678, %v1106
        %v1117 = vmul.f32 %v679, %v1106
        %v1118 = vmul.f32 %v680, %v1106
        %v1119 = vmul.f32 %v681, %v1106
        %v1120 = vmul.f32 %v682, %v1106
        %v1121 = vmul.f32 %v683, %v1106
        %v1122 = vmul.f32 %v684, %v1106
        %v1123 = vmul.f32 %v685, %v1106
        %v1124 = vmul.f32 %v686, %v1106
        %v1125 = vmul.f32 %v687, %v1106
        %v1126 = vmul.f32 %v688, %v1106
        %v1127 = vmul.f32 %v689, %v1106
        %v1128 = vmul.f32 %v690, %v1106
        %v1129 = vmul.f32 %v691, %v1106
        %v1130 = vmul.f32 %v692, %v1106
        %v1131 = vmul.f32 %v693, %v1106
        %v1132 = vmul.f32 %v694, %v1106
        %v1133 = vmul.f32 %v695, %v1106
        %v1134 = vmul.f32 %v696, %v1106
        %v1135 = vmul.f32 %v697, %v1106
        %v1136 = vmul.f32 %v698, %v1106
        %v1137 = vmul.f32 %v699, %v1106
        %v1138 = vmul.f32 %v700, %v1106
        %v1139 = vld [vmem:[%s1] sm:$0x1]
        %v1141 = vlaneseq
        %v1142 = vshrl.u32 %v1141, 7
        %v1143 = vsub.s32 0, %v1142
        %v1144 = vrot.slane %v1139, %v1143
        %v1146 = vmul.f32 %v1107, %v1144
        %v1147 = vmul.f32 %v1108, %v1144
        %v1148 = vmul.f32 %v1109, %v1144
        %v1149 = vmul.f32 %v1110, %v1144
        %v1150 = vmul.f32 %v1111, %v1144
        %v1151 = vmul.f32 %v1112, %v1144
        %v1152 = vmul.f32 %v1113, %v1144
        %v1153 = vmul.f32 %v1114, %v1144
        %v1154 = vmul.f32 %v1115, %v1144
        %v1155 = vmul.f32 %v1116, %v1144
        %v1156 = vmul.f32 %v1117, %v1144
        %v1157 = vmul.f32 %v1118, %v1144
        %v1158 = vmul.f32 %v1119, %v1144
        %v1159 = vmul.f32 %v1120, %v1144
        %v1160 = vmul.f32 %v1121, %v1144
        %v1161 = vmul.f32 %v1122, %v1144
        %v1162 = vmul.f32 %v1123, %v1144
        %v1163 = vmul.f32 %v1124, %v1144
        %v1164 = vmul.f32 %v1125, %v1144
        %v1165 = vmul.f32 %v1126, %v1144
        %v1166 = vmul.f32 %v1127, %v1144
        %v1167 = vmul.f32 %v1128, %v1144
        %v1168 = vmul.f32 %v1129, %v1144
        %v1169 = vmul.f32 %v1130, %v1144
        %v1170 = vmul.f32 %v1131, %v1144
        %v1171 = vmul.f32 %v1132, %v1144
        %v1172 = vmul.f32 %v1133, %v1144
        %v1173 = vmul.f32 %v1134, %v1144
        %v1174 = vmul.f32 %v1135, %v1144
        %v1175 = vmul.f32 %v1136, %v1144
        %v1176 = vmul.f32 %v1137, %v1144
        %v1177 = vmul.f32 %v1138, %v1144
        %v1178 = vld [vmem:[%s2] sm:$0x1]
        %v1180 = vlaneseq
        %v1181 = vshrl.u32 %v1180, 7
        %v1182 = vsub.s32 0, %v1181
        %v1183 = vrot.slane %v1178, %v1182
        %v1185 = vadd.f32 %v1146, %v1183
        %v1186 = vadd.f32 %v1147, %v1183
        %v1187 = vadd.f32 %v1148, %v1183
        %v1188 = vadd.f32 %v1149, %v1183
        %v1189 = vadd.f32 %v1150, %v1183
        %v1190 = vadd.f32 %v1151, %v1183
        %v1191 = vadd.f32 %v1152, %v1183
        %v1192 = vadd.f32 %v1153, %v1183
        %v1193 = vadd.f32 %v1154, %v1183
        %v1194 = vadd.f32 %v1155, %v1183
        %v1195 = vadd.f32 %v1156, %v1183
        %v1196 = vadd.f32 %v1157, %v1183
        %v1197 = vadd.f32 %v1158, %v1183
        %v1198 = vadd.f32 %v1159, %v1183
        %v1199 = vadd.f32 %v1160, %v1183
        %v1200 = vadd.f32 %v1161, %v1183
        %v1201 = vadd.f32 %v1162, %v1183
        %v1202 = vadd.f32 %v1163, %v1183
        %v1203 = vadd.f32 %v1164, %v1183
        %v1204 = vadd.f32 %v1165, %v1183
        %v1205 = vadd.f32 %v1166, %v1183
        %v1206 = vadd.f32 %v1167, %v1183
        %v1207 = vadd.f32 %v1168, %v1183
        %v1208 = vadd.f32 %v1169, %v1183
        %v1209 = vadd.f32 %v1170, %v1183
        %v1210 = vadd.f32 %v1171, %v1183
        %v1211 = vadd.f32 %v1172, %v1183
        %v1212 = vadd.f32 %v1173, %v1183
        %v1213 = vadd.f32 %v1174, %v1183
        %v1214 = vadd.f32 %v1175, %v1183
        %v1215 = vadd.f32 %v1176, %v1183
        %v1216 = vadd.f32 %v1177, %v1183
        %v1217 = vxor.u32 %v1185, 2147483648
        %v1218 = vxor.u32 %v1186, 2147483648
        %v1219 = vxor.u32 %v1187, 2147483648
        %v1220 = vxor.u32 %v1188, 2147483648
        %v1221 = vxor.u32 %v1189, 2147483648
        %v1222 = vxor.u32 %v1190, 2147483648
        %v1223 = vxor.u32 %v1191, 2147483648
        %v1224 = vxor.u32 %v1192, 2147483648
        %v1225 = vxor.u32 %v1193, 2147483648
        %v1226 = vxor.u32 %v1194, 2147483648
        %v1227 = vxor.u32 %v1195, 2147483648
        %v1228 = vxor.u32 %v1196, 2147483648
        %v1229 = vxor.u32 %v1197, 2147483648
        %v1230 = vxor.u32 %v1198, 2147483648
        %v1231 = vxor.u32 %v1199, 2147483648
        %v1232 = vxor.u32 %v1200, 2147483648
        %v1233 = vxor.u32 %v1201, 2147483648
        %v1234 = vxor.u32 %v1202, 2147483648
        %v1235 = vxor.u32 %v1203, 2147483648
        %v1236 = vxor.u32 %v1204, 2147483648
        %v1237 = vxor.u32 %v1205, 2147483648
        %v1238 = vxor.u32 %v1206, 2147483648
        %v1239 = vxor.u32 %v1207, 2147483648
        %v1240 = vxor.u32 %v1208, 2147483648
        %v1241 = vxor.u32 %v1209, 2147483648
        %v1242 = vxor.u32 %v1210, 2147483648
        %v1243 = vxor.u32 %v1211, 2147483648
        %v1244 = vxor.u32 %v1212, 2147483648
        %v1245 = vxor.u32 %v1213, 2147483648
        %v1246 = vxor.u32 %v1214, 2147483648
        %v1247 = vxor.u32 %v1215, 2147483648
        %v1248 = vxor.u32 %v1216, 2147483648
        %v1249 = vmul.f32 %v1217, 1.442695
        %v1250 = vpow.pop %v1249
        %v1251 = vmul.f32 %v1218, 1.442695
        %v1252 = vpow.pop %v1251
        %v1253 = vmul.f32 %v1219, 1.442695
        %v1254 = vpow.pop %v1253
        %v1255 = vmul.f32 %v1220, 1.442695
        %v1256 = vpow.pop %v1255
        %v1257 = vmul.f32 %v1221, 1.442695
        %v1258 = vpow.pop %v1257
        %v1259 = vmul.f32 %v1222, 1.442695
        %v1260 = vpow.pop %v1259
        %v1261 = vmul.f32 %v1223, 1.442695
        %v1262 = vpow.pop %v1261
        %v1263 = vmul.f32 %v1224, 1.442695
        %v1264 = vpow.pop %v1263
        %v1265 = vmul.f32 %v1225, 1.442695
        %v1266 = vpow.pop %v1265
        %v1267 = vmul.f32 %v1226, 1.442695
        %v1268 = vpow.pop %v1267
        %v1269 = vmul.f32 %v1227, 1.442695
        %v1270 = vpow.pop %v1269
        %v1271 = vmul.f32 %v1228, 1.442695
        %v1272 = vpow.pop %v1271
        %v1273 = vmul.f32 %v1229, 1.442695
        %v1274 = vpow.pop %v1273
        %v1275 = vmul.f32 %v1230, 1.442695
        %v1276 = vpow.pop %v1275
        %v1277 = vmul.f32 %v1231, 1.442695
        %v1278 = vpow.pop %v1277
        %v1279 = vmul.f32 %v1232, 1.442695
        %v1280 = vpow.pop %v1279
        %v1281 = vmul.f32 %v1233, 1.442695
        %v1282 = vpow.pop %v1281
        %v1283 = vmul.f32 %v1234, 1.442695
        %v1284 = vpow.pop %v1283
        %v1285 = vmul.f32 %v1235, 1.442695
        %v1286 = vpow.pop %v1285
        %v1287 = vmul.f32 %v1236, 1.442695
        %v1288 = vpow.pop %v1287
        %v1289 = vmul.f32 %v1237, 1.442695
        %v1290 = vpow.pop %v1289
        %v1291 = vmul.f32 %v1238, 1.442695
        %v1292 = vpow.pop %v1291
        %v1293 = vmul.f32 %v1239, 1.442695
        %v1294 = vpow.pop %v1293
        %v1295 = vmul.f32 %v1240, 1.442695
        %v1296 = vpow.pop %v1295
        %v1297 = vmul.f32 %v1241, 1.442695
        %v1298 = vpow.pop %v1297
        %v1299 = vmul.f32 %v1242, 1.442695
        %v1300 = vpow.pop %v1299
        %v1301 = vmul.f32 %v1243, 1.442695
        %v1302 = vpow.pop %v1301
        %v1303 = vmul.f32 %v1244, 1.442695
        %v1304 = vpow.pop %v1303
        %v1305 = vmul.f32 %v1245, 1.442695
        %v1306 = vpow.pop %v1305
        %v1307 = vmul.f32 %v1246, 1.442695
        %v1308 = vpow.pop %v1307
        %v1309 = vmul.f32 %v1247, 1.442695
        %v1310 = vpow.pop %v1309
        %v1311 = vmul.f32 %v1248, 1.442695
        %v1312 = vpow.pop %v1311
        %v1313 = vadd.f32 %v1250, 1.0
        %v1314 = vadd.f32 %v1252, 1.0
        %v1315 = vadd.f32 %v1254, 1.0
        %v1316 = vadd.f32 %v1256, 1.0
        %v1317 = vadd.f32 %v1258, 1.0
        %v1318 = vadd.f32 %v1260, 1.0
        %v1319 = vadd.f32 %v1262, 1.0
        %v1320 = vadd.f32 %v1264, 1.0
        %v1321 = vadd.f32 %v1266, 1.0
        %v1322 = vadd.f32 %v1268, 1.0
        %v1323 = vadd.f32 %v1270, 1.0
        %v1324 = vadd.f32 %v1272, 1.0
        %v1325 = vadd.f32 %v1274, 1.0
        %v1326 = vadd.f32 %v1276, 1.0
        %v1327 = vadd.f32 %v1278, 1.0
        %v1328 = vadd.f32 %v1280, 1.0
        %v1329 = vadd.f32 %v1282, 1.0
        %v1330 = vadd.f32 %v1284, 1.0
        %v1331 = vadd.f32 %v1286, 1.0
        %v1332 = vadd.f32 %v1288, 1.0
        %v1333 = vadd.f32 %v1290, 1.0
        %v1334 = vadd.f32 %v1292, 1.0
        %v1335 = vadd.f32 %v1294, 1.0
        %v1336 = vadd.f32 %v1296, 1.0
        %v1337 = vadd.f32 %v1298, 1.0
        %v1338 = vadd.f32 %v1300, 1.0
        %v1339 = vadd.f32 %v1302, 1.0
        %v1340 = vadd.f32 %v1304, 1.0
        %v1341 = vadd.f32 %v1306, 1.0
        %v1342 = vadd.f32 %v1308, 1.0
        %v1343 = vadd.f32 %v1310, 1.0
        %v1344 = vadd.f32 %v1312, 1.0
        %v1345 = vrcp.pop %v1313
        %v1346 = vmul.f32 1.0, %v1345
        %v1347 = vrcp.pop %v1314
        %v1348 = vmul.f32 1.0, %v1347
        %v1349 = vrcp.pop %v1315
        %v1350 = vmul.f32 1.0, %v1349
        %v1351 = vrcp.pop %v1316
        %v1352 = vmul.f32 1.0, %v1351
        %v1353 = vrcp.pop %v1317
        %v1354 = vmul.f32 1.0, %v1353
        %v1355 = vrcp.pop %v1318
        %v1356 = vmul.f32 1.0, %v1355
        %v1357 = vrcp.pop %v1319
        %v1358 = vmul.f32 1.0, %v1357
        %v1359 = vrcp.pop %v1320
        %v1360 = vmul.f32 1.0, %v1359
        %v1361 = vrcp.pop %v1321
        %v1362 = vmul.f32 1.0, %v1361
        %v1363 = vrcp.pop %v1322
        %v1364 = vmul.f32 1.0, %v1363
        %v1365 = vrcp.pop %v1323
        %v1366 = vmul.f32 1.0, %v1365
        %v1367 = vrcp.pop %v1324
        %v1368 = vmul.f32 1.0, %v1367
        %v1369 = vrcp.pop %v1325
        %v1370 = vmul.f32 1.0, %v1369
        %v1371 = vrcp.pop %v1326
        %v1372 = vmul.f32 1.0, %v1371
        %v1373 = vrcp.pop %v1327
        %v1374 = vmul.f32 1.0, %v1373
        %v1375 = vrcp.pop %v1328
        %v1376 = vmul.f32 1.0, %v1375
        %v1377 = vrcp.pop %v1329
        %v1378 = vmul.f32 1.0, %v1377
        %v1379 = vrcp.pop %v1330
        %v1380 = vmul.f32 1.0, %v1379
        %v1381 = vrcp.pop %v1331
        %v1382 = vmul.f32 1.0, %v1381
        %v1383 = vrcp.pop %v1332
        %v1384 = vmul.f32 1.0, %v1383
        %v1385 = vrcp.pop %v1333
        %v1386 = vmul.f32 1.0, %v1385
        %v1387 = vrcp.pop %v1334
        %v1388 = vmul.f32 1.0, %v1387
        %v1389 = vrcp.pop %v1335
        %v1390 = vmul.f32 1.0, %v1389
        %v1391 = vrcp.pop %v1336
        %v1392 = vmul.f32 1.0, %v1391
        %v1393 = vrcp.pop %v1337
        %v1394 = vmul.f32 1.0, %v1393
        %v1395 = vrcp.pop %v1338
        %v1396 = vmul.f32 1.0, %v1395
        %v1397 = vrcp.pop %v1339
        %v1398 = vmul.f32 1.0, %v1397
        %v1399 = vrcp.pop %v1340
        %v1400 = vmul.f32 1.0, %v1399
        %v1401 = vrcp.pop %v1341
        %v1402 = vmul.f32 1.0, %v1401
        %v1403 = vrcp.pop %v1342
        %v1404 = vmul.f32 1.0, %v1403
        %v1405 = vrcp.pop %v1343
        %v1406 = vmul.f32 1.0, %v1405
        %v1407 = vrcp.pop %v1344
        %v1408 = vmul.f32 1.0, %v1407
        %v1409 = vmul.f32 %v1185, %v1346
        %v1410 = vmul.f32 %v1186, %v1348
        %v1411 = vmul.f32 %v1187, %v1350
        %v1412 = vmul.f32 %v1188, %v1352
        %v1413 = vmul.f32 %v1189, %v1354
        %v1414 = vmul.f32 %v1190, %v1356
        %v1415 = vmul.f32 %v1191, %v1358
        %v1416 = vmul.f32 %v1192, %v1360
        %v1417 = vmul.f32 %v1193, %v1362
        %v1418 = vmul.f32 %v1194, %v1364
        %v1419 = vmul.f32 %v1195, %v1366
        %v1420 = vmul.f32 %v1196, %v1368
        %v1421 = vmul.f32 %v1197, %v1370
        %v1422 = vmul.f32 %v1198, %v1372
        %v1423 = vmul.f32 %v1199, %v1374
        %v1424 = vmul.f32 %v1200, %v1376
        %v1425 = vmul.f32 %v1201, %v1378
        %v1426 = vmul.f32 %v1202, %v1380
        %v1427 = vmul.f32 %v1203, %v1382
        %v1428 = vmul.f32 %v1204, %v1384
        %v1429 = vmul.f32 %v1205, %v1386
        %v1430 = vmul.f32 %v1206, %v1388
        %v1431 = vmul.f32 %v1207, %v1390
        %v1432 = vmul.f32 %v1208, %v1392
        %v1433 = vmul.f32 %v1209, %v1394
        %v1434 = vmul.f32 %v1210, %v1396
        %v1435 = vmul.f32 %v1211, %v1398
        %v1436 = vmul.f32 %v1212, %v1400
        %v1437 = vmul.f32 %v1213, %v1402
        %v1438 = vmul.f32 %v1214, %v1404
        %v1439 = vmul.f32 %v1215, %v1406
        %v1440 = vmul.f32 %v1216, %v1408
        %1441 = vst [vmem:[%s242] sm:$0xff] %v1409
        %1442 = vst [vmem:[%s242 + $0x8] sm:$0xff] %v1410
        %1443 = vst [vmem:[%s242 + $0x10] sm:$0xff] %v1411
        %1444 = vst [vmem:[%s242 + $0x18] sm:$0xff] %v1412
        %1445 = vst [vmem:[%s242 + $0x20] sm:$0xff] %v1413
        %1446 = vst [vmem:[%s242 + $0x28] sm:$0xff] %v1414
        %1447 = vst [vmem:[%s242 + $0x30] sm:$0xff] %v1415
        %1448 = vst [vmem:[%s242 + $0x38] sm:$0xff] %v1416
        %1449 = vst [vmem:[%s242 + $0x40] sm:$0xff] %v1417
        %1450 = vst [vmem:[%s242 + $0x48] sm:$0xff] %v1418
        %1451 = vst [vmem:[%s242 + $0x50] sm:$0xff] %v1419
        %1452 = vst [vmem:[%s242 + $0x58] sm:$0xff] %v1420
        %1453 = vst [vmem:[%s242 + $0x60] sm:$0xff] %v1421
        %1454 = vst [vmem:[%s242 + $0x68] sm:$0xff] %v1422
        %1455 = vst [vmem:[%s242 + $0x70] sm:$0xff] %v1423
        %1456 = vst [vmem:[%s242 + $0x78] sm:$0xff] %v1424
        %1457 = vst [vmem:[%s242 + $0x80] sm:$0xff] %v1425
        %1458 = vst [vmem:[%s242 + $0x88] sm:$0xff] %v1426
        %1459 = vst [vmem:[%s242 + $0x90] sm:$0xff] %v1427
        %1460 = vst [vmem:[%s242 + $0x98] sm:$0xff] %v1428
        %1461 = vst [vmem:[%s242 + $0xa0] sm:$0xff] %v1429
        %1462 = vst [vmem:[%s242 + $0xa8] sm:$0xff] %v1430
        %1463 = vst [vmem:[%s242 + $0xb0] sm:$0xff] %v1431
        %1464 = vst [vmem:[%s242 + $0xb8] sm:$0xff] %v1432
        %1465 = vst [vmem:[%s242 + $0xc0] sm:$0xff] %v1433
        %1466 = vst [vmem:[%s242 + $0xc8] sm:$0xff] %v1434
        %1467 = vst [vmem:[%s242 + $0xd0] sm:$0xff] %v1435
        %1468 = vst [vmem:[%s242 + $0xd8] sm:$0xff] %v1436
        %1469 = vst [vmem:[%s242 + $0xe0] sm:$0xff] %v1437
        %1470 = vst [vmem:[%s242 + $0xe8] sm:$0xff] %v1438
        %1471 = vst [vmem:[%s242 + $0xf0] sm:$0xff] %v1439
        %1472 = vst [vmem:[%s242 + $0xf8] sm:$0xff] %v1440
        %s1473 = sand.u32 %s140, 1
        %s1474 = scalar_lea.sflag [#allocation4], %s1473
        %s1475 = sand.u32 %s140, 1
        %s1476 = smul.addr %s1475, 256
        %s1477 = scalar_lea.vmem [#allocation5], %s1476
        // Predicated region
        $region45: #{tpu_custom_call.1} parent=39 // pred_check
          %p1478 = pneg %p150
        $region46: #{tpu_custom_call.1} parent=39 // pred_check_branch
          %1480 = sbr.rel (%p1478) target = $region48
        $region47: #{tpu_custom_call.1} parent=39 // pred_region
          %s1482 = ssub.s32 4096, 4096
          %1483 = vsyncadd %s1474, %s1482
          %s1484 = smul.addr %s22, 32
          %s1485 = smul.addr %s1484, 128
          %s1486 = scalar_lea.hbm %s5, %s1485
          %s1487 = sshll.u32 %s1477, 4
          %s1488 = int_to_ptr.vmem [resolvable:$true] %s1487
          %1493 = dma.vmem_to_hbm [thread:$0]  %s1488, 4096, %s1486, %s1474, 128, 128, 8
        $region48: #{tpu_custom_call.1} parent=39 // pred_fallthru
          _
      $region40: #{tpu_custom_call.1} parent=5 // pred_fallthru
        _
      %p1494 = scmp.le.s32.totalorder 2, %s17
      // Predicated region
      $region49: #{tpu_custom_call.1} parent=5 // pred_check
        %p1495 = pneg %p1494
      $region50: #{tpu_custom_call.1} parent=5 // pred_check_branch
        %1497 = sbr.rel (%p1495) target = $region52
      $region51: #{tpu_custom_call.1} parent=5 // pred_region
        %s1498 = ssub.s32 %s17, 2
        // Predicated region
        $region53: #{tpu_custom_call.1} parent=51 // pred_check
          %p1499 = pneg %p156
        $region54: #{tpu_custom_call.1} parent=51 // pred_check_branch
          %1501 = sbr.rel (%p1499) target = $region56
        $region55: #{tpu_custom_call.1} parent=51 // pred_region
          %s1502 = sand.u32 %s141, 1
          %s1503 = scalar_lea.sflag [#allocation4], %s1502
          %s1504 = sand.u32 %s141, 1
          %s1505 = smul.addr %s1504, 256
          %s1506 = scalar_lea.vmem [#allocation5], %s1505
          %1507 = dma.done %s1503, 4096
        $region56: #{tpu_custom_call.1} parent=51 // pred_fallthru
          _
      $region52: #{tpu_custom_call.1} parent=5 // pred_fallthru
        _
    $region6: #{tpu_custom_call.1} parent=1 // loop_footer
      %s21 = sadd.s32 1, %s17
    $region7: #{tpu_custom_call.1} parent=1 // loop_footer_branch
      %16 = sbr.rel target = $region3
    $region8: #{tpu_custom_call.1} parent=1 // loop_exit
      _
    %1508 = vsyncpa [#allocation3], 1
    %s1509 = scalar_lea.sflag [#allocation3], 1
    %1510 = vsyncpa %s1509, 1
    %1511 = vsyncpa [#allocation4], 1
    %s1512 = scalar_lea.sflag [#allocation4], 1
    %1513 = vsyncpa %s1512, 1

</llo_original>
